<compile_context>
chip_gen: v7x
topology: tpu7x:2x2x1
jax: 0.10.0
libtpu: 0.0.40
codegen_flags: <defaults>
</compile_context>

<pallas_src>
import jax
import jax.numpy as jnp
from jax import lax
from jax.experimental import pallas as pl
from jax.experimental.pallas import tpu as pltpu


# ----------------------------- hardware sizing --------------------------------


def _vmem_capacity():
    """Per-TensorCore VMEM bytes; conservative (v7x) fallback if query fails."""
    try:
        cap = getattr(pltpu.get_tpu_info(), "vmem_capacity_bytes", None)
        if cap:
            return int(cap)
    except Exception:
        pass
    return 64 << 20


def _tile_config(s_total, f_g, f_l, n_batch):
    """Pick (S_sub, R).

    S_sub: sublane rows (of 128 lanes) per grid block — multiple of 8 or the
           full extent; sized from the per-chip VMEM budget.
    R:     rows per inner compute step — bounds live vregs
           (~(F_g+F_l+2) planes of (R,128) f32, each R/8 vregs).
    """
    r = (320 // (f_g + f_l + 2)) // 8 * 8
    r = max(8, min(256, r))

    if s_total % 8 != 0 or s_total <= r:
        # Full-extent block is always layout-legal; single inner step.
        return s_total, s_total

    cap = _vmem_capacity()
    budget = cap // 3                                  # double-buffered in+out
    bytes_per_row = (f_g + 2 * f_l) * 128 * 4 * 2      # g + x + out, f32, x2 bufs
    max_rows = max(r, (budget // bytes_per_row) // r * r)
    s_sub = min((s_total // r) * r, max_rows, (2048 // r) * r)
    s_sub = max(r, (s_sub // r) * r)

    # Keep >= 2 grid steps so v7x's second TensorCore has work.
    n_sp = -(-s_total // s_sub)
    if n_batch * n_sp < 2:
        half = -(-s_total // 2)
        s_sub = max(r, ((half + r - 1) // r) * r)
    return s_sub, r


# ------------------------------- kernel ---------------------------------------


def _make_attn_kernel(f_g, f_l, f_int, s_sub, r):
    """Build the kernel for static (F_g, F_l, F_int, S_sub, R)."""
    n_inner = s_sub // r
    assert n_inner * r == s_sub

    # TODO(synk): for large channel counts (>~32) a bf16 MXU path (per-chip
    # crossover) would beat this unrolled scalar-FMA chain; not needed at C=4.
    def _compute(g_blk, x_blk, wg_ref, wx_ref, b_ref, wp_ref, bp_ref, out_dtype):
        # g_blk: (F_g, R, 128) f32, x_blk: (F_l, R, 128) f32.
        # Stream over F_int so only (g, x, s, p) planes are ever live.
        p = None
        for f in range(f_int):
            s = g_blk[0] * wg_ref[f * f_g] + b_ref[f]
            for c in range(1, f_g):
                s = s + g_blk[c] * wg_ref[f * f_g + c]
            for c in range(f_l):
                s = s + x_blk[c] * wx_ref[f * f_l + c]
            s = jnp.maximum(s, 0.0)                     # ReLU
            t = s * wp_ref[f]
            p = t if p is None else p + t
        psi = jax.nn.sigmoid(p + bp_ref[0])             # (R, 128), EUP
        return (x_blk * psi[None, :, :]).astype(out_dtype)

    if n_inner == 1:
        def kernel(g_ref, x_ref, wg_ref, wx_ref, b_ref, wp_ref, bp_ref, out_ref):
            g_blk = g_ref[...].astype(jnp.float32)
            x_blk = x_ref[...].astype(jnp.float32)
            out_ref[...] = _compute(g_blk, x_blk, wg_ref, wx_ref, b_ref,
                                    wp_ref, bp_ref, out_ref.dtype)
    else:
        def kernel(g_ref, x_ref, wg_ref, wx_ref, b_ref, wp_ref, bp_ref, out_ref):
            def body(i, carry):
                r0 = pl.multiple_of(i * r, r)
                g_blk = g_ref[:, pl.ds(r0, r), :].astype(jnp.float32)
                x_blk = x_ref[:, pl.ds(r0, r), :].astype(jnp.float32)
                out_ref[:, pl.ds(r0, r), :] = _compute(
                    g_blk, x_blk, wg_ref, wx_ref, b_ref, wp_ref, bp_ref,
                    out_ref.dtype)
                return carry
            lax.fori_loop(0, n_inner, body, 0, unroll=(n_inner <= 8))

    return kernel


# ------------------------------- wrapper ---------------------------------------


def _attention_core(g4, x4, wg_flat, wx_flat, b, wp_flat, bp, s_sub, r):
    """g4: (N, F_g, S, 128), x4: (N, F_l, S, 128) -> (N, F_l, S, 128)."""
    n, f_g, s_total, _ = g4.shape
    _, f_l, _, _ = x4.shape
    f_int = b.shape[0]

    n_sp = -(-s_total // s_sub)
    grid = (n, n_sp)
    kernel = _make_attn_kernel(f_g, f_l, f_int, s_sub, r)

    data_spec = lambda ch: pl.BlockSpec((None, ch, s_sub, 128),
                                        lambda ni, si: (ni, 0, si, 0))
    smem_spec = pl.BlockSpec(memory_space=pltpu.MemorySpace.SMEM)
    cap = _vmem_capacity()

    return pl.pallas_call(
        kernel,
        out_shape=jax.ShapeDtypeStruct((n, f_l, s_total, 128), x4.dtype),
        grid=grid,
        in_specs=[
            data_spec(f_g),      # g tile   (lane+sublane dense)
            data_spec(f_l),      # x tile
            smem_spec,           # Wg^T flat (F_int*F_g,)  BN-folded
            smem_spec,           # Wx^T flat (F_int*F_l,)  BN-folded
            smem_spec,           # fused branch bias (F_int,)
            smem_spec,           # Wpsi^T (F_int,)          BN-folded
            smem_spec,           # bpsi (1,)
        ],
        out_specs=data_spec(f_l),
        compiler_params=pltpu.CompilerParams(
            dimension_semantics=("parallel", "parallel"),
            vmem_limit_bytes=min(int(cap * 3 // 4), 100 << 20),
        ),
    )(g4, x4, wg_flat, wx_flat, b, wp_flat, bp)


def _fold_bn(w, b, gamma, beta, mean, var, eps=1e-5):
    """Fold conv (w: (Cin, Cout), b: (Cout,)) with BatchNorm (inference)."""
    scale = gamma / jnp.sqrt(var + eps)
    w_eff = w * scale[None, :]
    b_eff = (b - mean) * scale + beta
    return w_eff, b_eff


def attention_block(g, x, params):
    """g: (N, F_g, H, W), x: (N, F_l, H, W)  ->  (N, F_l, H, W)."""
    n, f_g, h, w = g.shape
    _, f_l, _, _ = x.shape

    wg, bg = _fold_bn(params["wg"], params["bg"], params["gn_g"], params["bt_g"],
                      params["mu_g"], params["vr_g"])
    wx, bx = _fold_bn(params["wx"], params["bx"], params["gn_x"], params["bt_x"],
                      params["mu_x"], params["vr_x"])
    wp, bp = _fold_bn(params["wpsi"], params["bpsi"], params["gn_p"],
                      params["bt_p"], params["mu_p"], params["vr_p"])
    f_int = wg.shape[1]

    # NCHW -> (N, C, HW) is a free reshape; pad HW to a multiple of 128 so every
    # store is lane-dense, then fold spatial onto (sublane, lane).
    hw = h * w
    s_total = -(-hw // 128)
    hw_pad = s_total * 128
    g3 = g.reshape(n, f_g, hw)
    x3 = x.reshape(n, f_l, hw)
    if hw_pad != hw:
        g3 = jnp.pad(g3, ((0, 0), (0, 0), (0, hw_pad - hw)))
        x3 = jnp.pad(x3, ((0, 0), (0, 0), (0, hw_pad - hw)))
    g4 = g3.reshape(n, f_g, s_total, 128)
    x4 = x3.reshape(n, f_l, s_total, 128)

    s_sub, r = _tile_config(s_total, f_g, f_l, n)

    out4 = _attention_core(
        g4, x4,
        jnp.transpose(wg).reshape(-1),        # (F_int*F_g,): [f*F_g + c] = wg[c, f]
        jnp.transpose(wx).reshape(-1),        # (F_int*F_l,)
        (bg + bx),                            # fused branch bias (F_int,)
        wp.reshape(-1),                       # (F_int,)
        bp.reshape(-1),                       # (1,)
        s_sub, r,
    )
    out3 = out4.reshape(n, f_l, hw_pad)[:, :, :hw]
    return out3.reshape(n, f_l, h, w)


# ------------------------------ reference --------------------------------------


def _reference(g, x, params):
    """Pure-JAX reference of the same folded-BN forward pass."""
    wg, bg = _fold_bn(params["wg"], params["bg"], params["gn_g"], params["bt_g"],
                      params["mu_g"], params["vr_g"])
    wx, bx = _fold_bn(params["wx"], params["bx"], params["gn_x"], params["bt_x"],
                      params["mu_x"], params["vr_x"])
    wp, bp = _fold_bn(params["wpsi"], params["bpsi"], params["gn_p"],
                      params["bt_p"], params["mu_p"], params["vr_p"])
    g1 = jnp.einsum("nchw,cf->nfhw", g, wg) + bg[None, :, None, None]
    x1 = jnp.einsum("nchw,cf->nfhw", x, wx) + bx[None, :, None, None]
    s = jnp.maximum(g1 + x1, 0.0)
    p = jnp.einsum("nfhw,fo->nohw", s, wp) + bp[None, :, None, None]
    psi = jax.nn.sigmoid(p)
    return x * psi


def make_params(key, f_g, f_l, f_int):
    ks = jax.random.split(key, 9)
    p = {}
    # Conv weights stored as (Cin, Cout) for channel matmul; biases (Cout,).
    p["wg"] = jax.random.normal(ks[0], (f_g, f_int), jnp.float32) * 0.1
    p["bg"] = jax.random.normal(ks[1], (f_int,), jnp.float32) * 0.1
    p["wx"] = jax.random.normal(ks[2], (f_l, f_int), jnp.float32) * 0.1
    p["bx"] = jax.random.normal(ks[3], (f_int,), jnp.float32) * 0.1
    p["wpsi"] = jax.random.normal(ks[4], (f_int, 1), jnp.float32) * 0.1
    p["bpsi"] = jax.random.normal(ks[5], (1,), jnp.float32) * 0.1
    # BatchNorm (inference-mode) params / running stats, deterministic.
    p["gn_g"] = jnp.ones((f_int,), jnp.float32)
    p["bt_g"] = jnp.zeros((f_int,), jnp.float32)
    p["mu_g"] = jax.random.normal(ks[6], (f_int,), jnp.float32) * 0.05
    p["vr_g"] = jnp.ones((f_int,), jnp.float32) * 0.9
    p["gn_x"] = jnp.ones((f_int,), jnp.float32)
    p["bt_x"] = jnp.zeros((f_int,), jnp.float32)
    p["mu_x"] = jax.random.normal(ks[7], (f_int,), jnp.float32) * 0.05
    p["vr_x"] = jnp.ones((f_int,), jnp.float32) * 1.1
    p["gn_p"] = jnp.ones((1,), jnp.float32)
    p["bt_p"] = jnp.zeros((1,), jnp.float32)
    p["mu_p"] = jax.random.normal(ks[8], (1,), jnp.float32) * 0.05
    p["vr_p"] = jnp.ones((1,), jnp.float32)
    return p


if __name__ == "__main__":
    # Small shapes consistent with the module: F_g = F_l = 4, F_int = 8.
    N, F_g, F_l, F_int, H, W = 2, 4, 4, 8, 16, 16

    key = jax.random.PRNGKey(0)
    kg, kx, kp = jax.random.split(key, 3)
    g = jax.random.normal(kg, (N, F_g, H, W), jnp.float32)
    x = jax.random.normal(kx, (N, F_l, H, W), jnp.float32)
    params = make_params(kp, F_g, F_l, F_int)

    out = attention_block(g, x, params)
    out = jax.block_until_ready(out)

    ref = _reference(g, x, params)
    assert out.shape == (N, F_l, H, W)
    assert jnp.allclose(out, ref, atol=1e-5, rtol=1e-5), "mismatch vs reference"

    # TODO(synk): training-mode BatchNorm (batch-stat computation / running-stat
    # updates) is not implemented; BN is folded in inference mode.
    print("KERNEL_OK")
</pallas_src>

<mosaic_0001>
module attributes {stable_mosaic.version = 11 : i64} {
  func.func @kernel(%arg0: i32, %arg1: i32, %arg2: memref<1x4x2x128xf32, #tpu.memory_space<vmem>>, %arg3: memref<1x4x2x128xf32, #tpu.memory_space<vmem>>, %arg4: memref<32xf32, #tpu.memory_space<smem>>, %arg5: memref<32xf32, #tpu.memory_space<smem>>, %arg6: memref<8xf32, #tpu.memory_space<smem>>, %arg7: memref<8xf32, #tpu.memory_space<smem>>, %arg8: memref<1xf32, #tpu.memory_space<smem>>, %arg9: memref<1x4x2x128xf32, #tpu.memory_space<vmem>>) attributes {dimension_semantics = [#tpu.dimension_semantics<parallel>, #tpu.dimension_semantics<parallel>], iteration_bounds = array<i64: 2, 1>, scalar_prefetch = 0 : i64, scratch_operands = 0 : i64, tpu.core_type = #tpu.core_type<tc>, window_params = [{transform_indices = @transform_0, window_bounds = array<i64: 1, 4, 2, 128>}, {transform_indices = @transform_1, window_bounds = array<i64: 1, 4, 2, 128>}, {transform_indices = @transform_2, window_bounds = array<i64: 32>}, {transform_indices = @transform_3, window_bounds = array<i64: 32>}, {transform_indices = @transform_4, window_bounds = array<i64: 8>}, {transform_indices = @transform_5, window_bounds = array<i64: 8>}, {transform_indices = @transform_6, window_bounds = array<i64: 1>}, {transform_indices = @transform_7, window_bounds = array<i64: 1, 4, 2, 128>}]} {
    %c0 = arith.constant 0 : index
    %c0_0 = arith.constant 0 : index
    %c0_1 = arith.constant 0 : index
    %c0_2 = arith.constant 0 : index
    %0 = vector.load %arg2[%c0, %c0_0, %c0_1, %c0_2] : memref<1x4x2x128xf32, #tpu.memory_space<vmem>>, vector<1x4x2x128xf32>
    %1 = vector.shape_cast %0 : vector<1x4x2x128xf32> to vector<4x2x128xf32>
    %c0_3 = arith.constant 0 : index
    %c0_4 = arith.constant 0 : index
    %c0_5 = arith.constant 0 : index
    %c0_6 = arith.constant 0 : index
    %2 = vector.load %arg3[%c0_3, %c0_4, %c0_5, %c0_6] : memref<1x4x2x128xf32, #tpu.memory_space<vmem>>, vector<1x4x2x128xf32>
    %3 = vector.shape_cast %2 : vector<1x4x2x128xf32> to vector<4x2x128xf32>
    %4 = vector.extract_strided_slice %1 {offsets = [0, 0, 0], sizes = [1, 2, 128], strides = [1, 1, 1]} : vector<4x2x128xf32> to vector<1x2x128xf32>
    %5 = vector.shape_cast %4 : vector<1x2x128xf32> to vector<2x128xf32>
    %c0_7 = arith.constant 0 : index
    %6 = memref.load %arg4[%c0_7] : memref<32xf32, #tpu.memory_space<smem>>
    %7 = vector.broadcast %6 : f32 to vector<2x128xf32>
    %8 = arith.mulf %5, %7 : vector<2x128xf32>
    %c0_8 = arith.constant 0 : index
    %9 = memref.load %arg6[%c0_8] : memref<8xf32, #tpu.memory_space<smem>>
    %10 = vector.broadcast %9 : f32 to vector<2x128xf32>
    %11 = arith.addf %8, %10 : vector<2x128xf32>
    %12 = vector.extract_strided_slice %1 {offsets = [1, 0, 0], sizes = [1, 2, 128], strides = [1, 1, 1]} : vector<4x2x128xf32> to vector<1x2x128xf32>
    %13 = vector.shape_cast %12 : vector<1x2x128xf32> to vector<2x128xf32>
    %c1 = arith.constant 1 : index
    %14 = memref.load %arg4[%c1] : memref<32xf32, #tpu.memory_space<smem>>
    %15 = vector.broadcast %14 : f32 to vector<2x128xf32>
    %16 = arith.mulf %13, %15 : vector<2x128xf32>
    %17 = arith.addf %11, %16 : vector<2x128xf32>
    %18 = vector.extract_strided_slice %1 {offsets = [2, 0, 0], sizes = [1, 2, 128], strides = [1, 1, 1]} : vector<4x2x128xf32> to vector<1x2x128xf32>
    %19 = vector.shape_cast %18 : vector<1x2x128xf32> to vector<2x128xf32>
    %c2 = arith.constant 2 : index
    %20 = memref.load %arg4[%c2] : memref<32xf32, #tpu.memory_space<smem>>
    %21 = vector.broadcast %20 : f32 to vector<2x128xf32>
    %22 = arith.mulf %19, %21 : vector<2x128xf32>
    %23 = arith.addf %17, %22 : vector<2x128xf32>
    %24 = vector.extract_strided_slice %1 {offsets = [3, 0, 0], sizes = [1, 2, 128], strides = [1, 1, 1]} : vector<4x2x128xf32> to vector<1x2x128xf32>
    %25 = vector.shape_cast %24 : vector<1x2x128xf32> to vector<2x128xf32>
    %c3 = arith.constant 3 : index
    %26 = memref.load %arg4[%c3] : memref<32xf32, #tpu.memory_space<smem>>
    %27 = vector.broadcast %26 : f32 to vector<2x128xf32>
    %28 = arith.mulf %25, %27 : vector<2x128xf32>
    %29 = arith.addf %23, %28 : vector<2x128xf32>
    %30 = vector.extract_strided_slice %3 {offsets = [0, 0, 0], sizes = [1, 2, 128], strides = [1, 1, 1]} : vector<4x2x128xf32> to vector<1x2x128xf32>
    %31 = vector.shape_cast %30 : vector<1x2x128xf32> to vector<2x128xf32>
    %c0_9 = arith.constant 0 : index
    %32 = memref.load %arg5[%c0_9] : memref<32xf32, #tpu.memory_space<smem>>
    %33 = vector.broadcast %32 : f32 to vector<2x128xf32>
    %34 = arith.mulf %31, %33 : vector<2x128xf32>
    %35 = arith.addf %29, %34 : vector<2x128xf32>
    %36 = vector.extract_strided_slice %3 {offsets = [1, 0, 0], sizes = [1, 2, 128], strides = [1, 1, 1]} : vector<4x2x128xf32> to vector<1x2x128xf32>
    %37 = vector.shape_cast %36 : vector<1x2x128xf32> to vector<2x128xf32>
    %c1_10 = arith.constant 1 : index
    %38 = memref.load %arg5[%c1_10] : memref<32xf32, #tpu.memory_space<smem>>
    %39 = vector.broadcast %38 : f32 to vector<2x128xf32>
    %40 = arith.mulf %37, %39 : vector<2x128xf32>
    %41 = arith.addf %35, %40 : vector<2x128xf32>
    %42 = vector.extract_strided_slice %3 {offsets = [2, 0, 0], sizes = [1, 2, 128], strides = [1, 1, 1]} : vector<4x2x128xf32> to vector<1x2x128xf32>
    %43 = vector.shape_cast %42 : vector<1x2x128xf32> to vector<2x128xf32>
    %c2_11 = arith.constant 2 : index
    %44 = memref.load %arg5[%c2_11] : memref<32xf32, #tpu.memory_space<smem>>
    %45 = vector.broadcast %44 : f32 to vector<2x128xf32>
    %46 = arith.mulf %43, %45 : vector<2x128xf32>
    %47 = arith.addf %41, %46 : vector<2x128xf32>
    %48 = vector.extract_strided_slice %3 {offsets = [3, 0, 0], sizes = [1, 2, 128], strides = [1, 1, 1]} : vector<4x2x128xf32> to vector<1x2x128xf32>
    %49 = vector.shape_cast %48 : vector<1x2x128xf32> to vector<2x128xf32>
    %c3_12 = arith.constant 3 : index
    %50 = memref.load %arg5[%c3_12] : memref<32xf32, #tpu.memory_space<smem>>
    %51 = vector.broadcast %50 : f32 to vector<2x128xf32>
    %52 = arith.mulf %49, %51 : vector<2x128xf32>
    %53 = arith.addf %47, %52 : vector<2x128xf32>
    %cst = arith.constant 0.000000e+00 : f32
    %54 = vector.broadcast %cst : f32 to vector<2x128xf32>
    %55 = arith.maximumf %53, %54 : vector<2x128xf32>
    %c0_13 = arith.constant 0 : index
    %56 = memref.load %arg7[%c0_13] : memref<8xf32, #tpu.memory_space<smem>>
    %57 = vector.broadcast %56 : f32 to vector<2x128xf32>
    %58 = arith.mulf %55, %57 : vector<2x128xf32>
    %59 = vector.extract_strided_slice %1 {offsets = [0, 0, 0], sizes = [1, 2, 128], strides = [1, 1, 1]} : vector<4x2x128xf32> to vector<1x2x128xf32>
    %60 = vector.shape_cast %59 : vector<1x2x128xf32> to vector<2x128xf32>
    %c4 = arith.constant 4 : index
    %61 = memref.load %arg4[%c4] : memref<32xf32, #tpu.memory_space<smem>>
    %62 = vector.broadcast %61 : f32 to vector<2x128xf32>
    %63 = arith.mulf %60, %62 : vector<2x128xf32>
    %c1_14 = arith.constant 1 : index
    %64 = memref.load %arg6[%c1_14] : memref<8xf32, #tpu.memory_space<smem>>
    %65 = vector.broadcast %64 : f32 to vector<2x128xf32>
    %66 = arith.addf %63, %65 : vector<2x128xf32>
    %67 = vector.extract_strided_slice %1 {offsets = [1, 0, 0], sizes = [1, 2, 128], strides = [1, 1, 1]} : vector<4x2x128xf32> to vector<1x2x128xf32>
    %68 = vector.shape_cast %67 : vector<1x2x128xf32> to vector<2x128xf32>
    %c5 = arith.constant 5 : index
    %69 = memref.load %arg4[%c5] : memref<32xf32, #tpu.memory_space<smem>>
    %70 = vector.broadcast %69 : f32 to vector<2x128xf32>
    %71 = arith.mulf %68, %70 : vector<2x128xf32>
    %72 = arith.addf %66, %71 : vector<2x128xf32>
    %73 = vector.extract_strided_slice %1 {offsets = [2, 0, 0], sizes = [1, 2, 128], strides = [1, 1, 1]} : vector<4x2x128xf32> to vector<1x2x128xf32>
    %74 = vector.shape_cast %73 : vector<1x2x128xf32> to vector<2x128xf32>
    %c6 = arith.constant 6 : index
    %75 = memref.load %arg4[%c6] : memref<32xf32, #tpu.memory_space<smem>>
    %76 = vector.broadcast %75 : f32 to vector<2x128xf32>
    %77 = arith.mulf %74, %76 : vector<2x128xf32>
    %78 = arith.addf %72, %77 : vector<2x128xf32>
    %79 = vector.extract_strided_slice %1 {offsets = [3, 0, 0], sizes = [1, 2, 128], strides = [1, 1, 1]} : vector<4x2x128xf32> to vector<1x2x128xf32>
    %80 = vector.shape_cast %79 : vector<1x2x128xf32> to vector<2x128xf32>
    %c7 = arith.constant 7 : index
    %81 = memref.load %arg4[%c7] : memref<32xf32, #tpu.memory_space<smem>>
    %82 = vector.broadcast %81 : f32 to vector<2x128xf32>
    %83 = arith.mulf %80, %82 : vector<2x128xf32>
    %84 = arith.addf %78, %83 : vector<2x128xf32>
    %85 = vector.extract_strided_slice %3 {offsets = [0, 0, 0], sizes = [1, 2, 128], strides = [1, 1, 1]} : vector<4x2x128xf32> to vector<1x2x128xf32>
    %86 = vector.shape_cast %85 : vector<1x2x128xf32> to vector<2x128xf32>
    %c4_15 = arith.constant 4 : index
    %87 = memref.load %arg5[%c4_15] : memref<32xf32, #tpu.memory_space<smem>>
    %88 = vector.broadcast %87 : f32 to vector<2x128xf32>
    %89 = arith.mulf %86, %88 : vector<2x128xf32>
    %90 = arith.addf %84, %89 : vector<2x128xf32>
    %91 = vector.extract_strided_slice %3 {offsets = [1, 0, 0], sizes = [1, 2, 128], strides = [1, 1, 1]} : vector<4x2x128xf32> to vector<1x2x128xf32>
    %92 = vector.shape_cast %91 : vector<1x2x128xf32> to vector<2x128xf32>
    %c5_16 = arith.constant 5 : index
    %93 = memref.load %arg5[%c5_16] : memref<32xf32, #tpu.memory_space<smem>>
    %94 = vector.broadcast %93 : f32 to vector<2x128xf32>
    %95 = arith.mulf %92, %94 : vector<2x128xf32>
    %96 = arith.addf %90, %95 : vector<2x128xf32>
    %97 = vector.extract_strided_slice %3 {offsets = [2, 0, 0], sizes = [1, 2, 128], strides = [1, 1, 1]} : vector<4x2x128xf32> to vector<1x2x128xf32>
    %98 = vector.shape_cast %97 : vector<1x2x128xf32> to vector<2x128xf32>
    %c6_17 = arith.constant 6 : index
    %99 = memref.load %arg5[%c6_17] : memref<32xf32, #tpu.memory_space<smem>>
    %100 = vector.broadcast %99 : f32 to vector<2x128xf32>
    %101 = arith.mulf %98, %100 : vector<2x128xf32>
    %102 = arith.addf %96, %101 : vector<2x128xf32>
    %103 = vector.extract_strided_slice %3 {offsets = [3, 0, 0], sizes = [1, 2, 128], strides = [1, 1, 1]} : vector<4x2x128xf32> to vector<1x2x128xf32>
    %104 = vector.shape_cast %103 : vector<1x2x128xf32> to vector<2x128xf32>
    %c7_18 = arith.constant 7 : index
    %105 = memref.load %arg5[%c7_18] : memref<32xf32, #tpu.memory_space<smem>>
    %106 = vector.broadcast %105 : f32 to vector<2x128xf32>
    %107 = arith.mulf %104, %106 : vector<2x128xf32>
    %108 = arith.addf %102, %107 : vector<2x128xf32>
    %cst_19 = arith.constant 0.000000e+00 : f32
    %109 = vector.broadcast %cst_19 : f32 to vector<2x128xf32>
    %110 = arith.maximumf %108, %109 : vector<2x128xf32>
    %c1_20 = arith.constant 1 : index
    %111 = memref.load %arg7[%c1_20] : memref<8xf32, #tpu.memory_space<smem>>
    %112 = vector.broadcast %111 : f32 to vector<2x128xf32>
    %113 = arith.mulf %110, %112 : vector<2x128xf32>
    %114 = arith.addf %58, %113 : vector<2x128xf32>
    %115 = vector.extract_strided_slice %1 {offsets = [0, 0, 0], sizes = [1, 2, 128], strides = [1, 1, 1]} : vector<4x2x128xf32> to vector<1x2x128xf32>
    %116 = vector.shape_cast %115 : vector<1x2x128xf32> to vector<2x128xf32>
    %c8 = arith.constant 8 : index
    %117 = memref.load %arg4[%c8] : memref<32xf32, #tpu.memory_space<smem>>
    %118 = vector.broadcast %117 : f32 to vector<2x128xf32>
    %119 = arith.mulf %116, %118 : vector<2x128xf32>
    %c2_21 = arith.constant 2 : index
    %120 = memref.load %arg6[%c2_21] : memref<8xf32, #tpu.memory_space<smem>>
    %121 = vector.broadcast %120 : f32 to vector<2x128xf32>
    %122 = arith.addf %119, %121 : vector<2x128xf32>
    %123 = vector.extract_strided_slice %1 {offsets = [1, 0, 0], sizes = [1, 2, 128], strides = [1, 1, 1]} : vector<4x2x128xf32> to vector<1x2x128xf32>
    %124 = vector.shape_cast %123 : vector<1x2x128xf32> to vector<2x128xf32>
    %c9 = arith.constant 9 : index
    %125 = memref.load %arg4[%c9] : memref<32xf32, #tpu.memory_space<smem>>
    %126 = vector.broadcast %125 : f32 to vector<2x128xf32>
    %127 = arith.mulf %124, %126 : vector<2x128xf32>
    %128 = arith.addf %122, %127 : vector<2x128xf32>
    %129 = vector.extract_strided_slice %1 {offsets = [2, 0, 0], sizes = [1, 2, 128], strides = [1, 1, 1]} : vector<4x2x128xf32> to vector<1x2x128xf32>
    %130 = vector.shape_cast %129 : vector<1x2x128xf32> to vector<2x128xf32>
    %c10 = arith.constant 10 : index
    %131 = memref.load %arg4[%c10] : memref<32xf32, #tpu.memory_space<smem>>
    %132 = vector.broadcast %131 : f32 to vector<2x128xf32>
    %133 = arith.mulf %130, %132 : vector<2x128xf32>
    %134 = arith.addf %128, %133 : vector<2x128xf32>
    %135 = vector.extract_strided_slice %1 {offsets = [3, 0, 0], sizes = [1, 2, 128], strides = [1, 1, 1]} : vector<4x2x128xf32> to vector<1x2x128xf32>
    %136 = vector.shape_cast %135 : vector<1x2x128xf32> to vector<2x128xf32>
    %c11 = arith.constant 11 : index
    %137 = memref.load %arg4[%c11] : memref<32xf32, #tpu.memory_space<smem>>
    %138 = vector.broadcast %137 : f32 to vector<2x128xf32>
    %139 = arith.mulf %136, %138 : vector<2x128xf32>
    %140 = arith.addf %134, %139 : vector<2x128xf32>
    %141 = vector.extract_strided_slice %3 {offsets = [0, 0, 0], sizes = [1, 2, 128], strides = [1, 1, 1]} : vector<4x2x128xf32> to vector<1x2x128xf32>
    %142 = vector.shape_cast %141 : vector<1x2x128xf32> to vector<2x128xf32>
    %c8_22 = arith.constant 8 : index
    %143 = memref.load %arg5[%c8_22] : memref<32xf32, #tpu.memory_space<smem>>
    %144 = vector.broadcast %143 : f32 to vector<2x128xf32>
    %145 = arith.mulf %142, %144 : vector<2x128xf32>
    %146 = arith.addf %140, %145 : vector<2x128xf32>
    %147 = vector.extract_strided_slice %3 {offsets = [1, 0, 0], sizes = [1, 2, 128], strides = [1, 1, 1]} : vector<4x2x128xf32> to vector<1x2x128xf32>
    %148 = vector.shape_cast %147 : vector<1x2x128xf32> to vector<2x128xf32>
    %c9_23 = arith.constant 9 : index
    %149 = memref.load %arg5[%c9_23] : memref<32xf32, #tpu.memory_space<smem>>
    %150 = vector.broadcast %149 : f32 to vector<2x128xf32>
    %151 = arith.mulf %148, %150 : vector<2x128xf32>
    %152 = arith.addf %146, %151 : vector<2x128xf32>
    %153 = vector.extract_strided_slice %3 {offsets = [2, 0, 0], sizes = [1, 2, 128], strides = [1, 1, 1]} : vector<4x2x128xf32> to vector<1x2x128xf32>
    %154 = vector.shape_cast %153 : vector<1x2x128xf32> to vector<2x128xf32>
    %c10_24 = arith.constant 10 : index
    %155 = memref.load %arg5[%c10_24] : memref<32xf32, #tpu.memory_space<smem>>
    %156 = vector.broadcast %155 : f32 to vector<2x128xf32>
    %157 = arith.mulf %154, %156 : vector<2x128xf32>
    %158 = arith.addf %152, %157 : vector<2x128xf32>
    %159 = vector.extract_strided_slice %3 {offsets = [3, 0, 0], sizes = [1, 2, 128], strides = [1, 1, 1]} : vector<4x2x128xf32> to vector<1x2x128xf32>
    %160 = vector.shape_cast %159 : vector<1x2x128xf32> to vector<2x128xf32>
    %c11_25 = arith.constant 11 : index
    %161 = memref.load %arg5[%c11_25] : memref<32xf32, #tpu.memory_space<smem>>
    %162 = vector.broadcast %161 : f32 to vector<2x128xf32>
    %163 = arith.mulf %160, %162 : vector<2x128xf32>
    %164 = arith.addf %158, %163 : vector<2x128xf32>
    %cst_26 = arith.constant 0.000000e+00 : f32
    %165 = vector.broadcast %cst_26 : f32 to vector<2x128xf32>
    %166 = arith.maximumf %164, %165 : vector<2x128xf32>
    %c2_27 = arith.constant 2 : index
    %167 = memref.load %arg7[%c2_27] : memref<8xf32, #tpu.memory_space<smem>>
    %168 = vector.broadcast %167 : f32 to vector<2x128xf32>
    %169 = arith.mulf %166, %168 : vector<2x128xf32>
    %170 = arith.addf %114, %169 : vector<2x128xf32>
    %171 = vector.extract_strided_slice %1 {offsets = [0, 0, 0], sizes = [1, 2, 128], strides = [1, 1, 1]} : vector<4x2x128xf32> to vector<1x2x128xf32>
    %172 = vector.shape_cast %171 : vector<1x2x128xf32> to vector<2x128xf32>
    %c12 = arith.constant 12 : index
    %173 = memref.load %arg4[%c12] : memref<32xf32, #tpu.memory_space<smem>>
    %174 = vector.broadcast %173 : f32 to vector<2x128xf32>
    %175 = arith.mulf %172, %174 : vector<2x128xf32>
    %c3_28 = arith.constant 3 : index
    %176 = memref.load %arg6[%c3_28] : memref<8xf32, #tpu.memory_space<smem>>
    %177 = vector.broadcast %176 : f32 to vector<2x128xf32>
    %178 = arith.addf %175, %177 : vector<2x128xf32>
    %179 = vector.extract_strided_slice %1 {offsets = [1, 0, 0], sizes = [1, 2, 128], strides = [1, 1, 1]} : vector<4x2x128xf32> to vector<1x2x128xf32>
    %180 = vector.shape_cast %179 : vector<1x2x128xf32> to vector<2x128xf32>
    %c13 = arith.constant 13 : index
    %181 = memref.load %arg4[%c13] : memref<32xf32, #tpu.memory_space<smem>>
    %182 = vector.broadcast %181 : f32 to vector<2x128xf32>
    %183 = arith.mulf %180, %182 : vector<2x128xf32>
    %184 = arith.addf %178, %183 : vector<2x128xf32>
    %185 = vector.extract_strided_slice %1 {offsets = [2, 0, 0], sizes = [1, 2, 128], strides = [1, 1, 1]} : vector<4x2x128xf32> to vector<1x2x128xf32>
    %186 = vector.shape_cast %185 : vector<1x2x128xf32> to vector<2x128xf32>
    %c14 = arith.constant 14 : index
    %187 = memref.load %arg4[%c14] : memref<32xf32, #tpu.memory_space<smem>>
    %188 = vector.broadcast %187 : f32 to vector<2x128xf32>
    %189 = arith.mulf %186, %188 : vector<2x128xf32>
    %190 = arith.addf %184, %189 : vector<2x128xf32>
    %191 = vector.extract_strided_slice %1 {offsets = [3, 0, 0], sizes = [1, 2, 128], strides = [1, 1, 1]} : vector<4x2x128xf32> to vector<1x2x128xf32>
    %192 = vector.shape_cast %191 : vector<1x2x128xf32> to vector<2x128xf32>
    %c15 = arith.constant 15 : index
    %193 = memref.load %arg4[%c15] : memref<32xf32, #tpu.memory_space<smem>>
    %194 = vector.broadcast %193 : f32 to vector<2x128xf32>
    %195 = arith.mulf %192, %194 : vector<2x128xf32>
    %196 = arith.addf %190, %195 : vector<2x128xf32>
    %197 = vector.extract_strided_slice %3 {offsets = [0, 0, 0], sizes = [1, 2, 128], strides = [1, 1, 1]} : vector<4x2x128xf32> to vector<1x2x128xf32>
    %198 = vector.shape_cast %197 : vector<1x2x128xf32> to vector<2x128xf32>
    %c12_29 = arith.constant 12 : index
    %199 = memref.load %arg5[%c12_29] : memref<32xf32, #tpu.memory_space<smem>>
    %200 = vector.broadcast %199 : f32 to vector<2x128xf32>
    %201 = arith.mulf %198, %200 : vector<2x128xf32>
    %202 = arith.addf %196, %201 : vector<2x128xf32>
    %203 = vector.extract_strided_slice %3 {offsets = [1, 0, 0], sizes = [1, 2, 128], strides = [1, 1, 1]} : vector<4x2x128xf32> to vector<1x2x128xf32>
    %204 = vector.shape_cast %203 : vector<1x2x128xf32> to vector<2x128xf32>
    %c13_30 = arith.constant 13 : index
    %205 = memref.load %arg5[%c13_30] : memref<32xf32, #tpu.memory_space<smem>>
    %206 = vector.broadcast %205 : f32 to vector<2x128xf32>
    %207 = arith.mulf %204, %206 : vector<2x128xf32>
    %208 = arith.addf %202, %207 : vector<2x128xf32>
    %209 = vector.extract_strided_slice %3 {offsets = [2, 0, 0], sizes = [1, 2, 128], strides = [1, 1, 1]} : vector<4x2x128xf32> to vector<1x2x128xf32>
    %210 = vector.shape_cast %209 : vector<1x2x128xf32> to vector<2x128xf32>
    %c14_31 = arith.constant 14 : index
    %211 = memref.load %arg5[%c14_31] : memref<32xf32, #tpu.memory_space<smem>>
    %212 = vector.broadcast %211 : f32 to vector<2x128xf32>
    %213 = arith.mulf %210, %212 : vector<2x128xf32>
    %214 = arith.addf %208, %213 : vector<2x128xf32>
    %215 = vector.extract_strided_slice %3 {offsets = [3, 0, 0], sizes = [1, 2, 128], strides = [1, 1, 1]} : vector<4x2x128xf32> to vector<1x2x128xf32>
    %216 = vector.shape_cast %215 : vector<1x2x128xf32> to vector<2x128xf32>
    %c15_32 = arith.constant 15 : index
    %217 = memref.load %arg5[%c15_32] : memref<32xf32, #tpu.memory_space<smem>>
    %218 = vector.broadcast %217 : f32 to vector<2x128xf32>
    %219 = arith.mulf %216, %218 : vector<2x128xf32>
    %220 = arith.addf %214, %219 : vector<2x128xf32>
    %cst_33 = arith.constant 0.000000e+00 : f32
    %221 = vector.broadcast %cst_33 : f32 to vector<2x128xf32>
    %222 = arith.maximumf %220, %221 : vector<2x128xf32>
    %c3_34 = arith.constant 3 : index
    %223 = memref.load %arg7[%c3_34] : memref<8xf32, #tpu.memory_space<smem>>
    %224 = vector.broadcast %223 : f32 to vector<2x128xf32>
    %225 = arith.mulf %222, %224 : vector<2x128xf32>
    %226 = arith.addf %170, %225 : vector<2x128xf32>
    %227 = vector.extract_strided_slice %1 {offsets = [0, 0, 0], sizes = [1, 2, 128], strides = [1, 1, 1]} : vector<4x2x128xf32> to vector<1x2x128xf32>
    %228 = vector.shape_cast %227 : vector<1x2x128xf32> to vector<2x128xf32>
    %c16 = arith.constant 16 : index
    %229 = memref.load %arg4[%c16] : memref<32xf32, #tpu.memory_space<smem>>
    %230 = vector.broadcast %229 : f32 to vector<2x128xf32>
    %231 = arith.mulf %228, %230 : vector<2x128xf32>
    %c4_35 = arith.constant 4 : index
    %232 = memref.load %arg6[%c4_35] : memref<8xf32, #tpu.memory_space<smem>>
    %233 = vector.broadcast %232 : f32 to vector<2x128xf32>
    %234 = arith.addf %231, %233 : vector<2x128xf32>
    %235 = vector.extract_strided_slice %1 {offsets = [1, 0, 0], sizes = [1, 2, 128], strides = [1, 1, 1]} : vector<4x2x128xf32> to vector<1x2x128xf32>
    %236 = vector.shape_cast %235 : vector<1x2x128xf32> to vector<2x128xf32>
    %c17 = arith.constant 17 : index
    %237 = memref.load %arg4[%c17] : memref<32xf32, #tpu.memory_space<smem>>
    %238 = vector.broadcast %237 : f32 to vector<2x128xf32>
    %239 = arith.mulf %236, %238 : vector<2x128xf32>
    %240 = arith.addf %234, %239 : vector<2x128xf32>
    %241 = vector.extract_strided_slice %1 {offsets = [2, 0, 0], sizes = [1, 2, 128], strides = [1, 1, 1]} : vector<4x2x128xf32> to vector<1x2x128xf32>
    %242 = vector.shape_cast %241 : vector<1x2x128xf32> to vector<2x128xf32>
    %c18 = arith.constant 18 : index
    %243 = memref.load %arg4[%c18] : memref<32xf32, #tpu.memory_space<smem>>
    %244 = vector.broadcast %243 : f32 to vector<2x128xf32>
    %245 = arith.mulf %242, %244 : vector<2x128xf32>
    %246 = arith.addf %240, %245 : vector<2x128xf32>
    %247 = vector.extract_strided_slice %1 {offsets = [3, 0, 0], sizes = [1, 2, 128], strides = [1, 1, 1]} : vector<4x2x128xf32> to vector<1x2x128xf32>
    %248 = vector.shape_cast %247 : vector<1x2x128xf32> to vector<2x128xf32>
    %c19 = arith.constant 19 : index
    %249 = memref.load %arg4[%c19] : memref<32xf32, #tpu.memory_space<smem>>
    %250 = vector.broadcast %249 : f32 to vector<2x128xf32>
    %251 = arith.mulf %248, %250 : vector<2x128xf32>
    %252 = arith.addf %246, %251 : vector<2x128xf32>
    %253 = vector.extract_strided_slice %3 {offsets = [0, 0, 0], sizes = [1, 2, 128], strides = [1, 1, 1]} : vector<4x2x128xf32> to vector<1x2x128xf32>
    %254 = vector.shape_cast %253 : vector<1x2x128xf32> to vector<2x128xf32>
    %c16_36 = arith.constant 16 : index
    %255 = memref.load %arg5[%c16_36] : memref<32xf32, #tpu.memory_space<smem>>
    %256 = vector.broadcast %255 : f32 to vector<2x128xf32>
    %257 = arith.mulf %254, %256 : vector<2x128xf32>
    %258 = arith.addf %252, %257 : vector<2x128xf32>
    %259 = vector.extract_strided_slice %3 {offsets = [1, 0, 0], sizes = [1, 2, 128], strides = [1, 1, 1]} : vector<4x2x128xf32> to vector<1x2x128xf32>
    %260 = vector.shape_cast %259 : vector<1x2x128xf32> to vector<2x128xf32>
    %c17_37 = arith.constant 17 : index
    %261 = memref.load %arg5[%c17_37] : memref<32xf32, #tpu.memory_space<smem>>
    %262 = vector.broadcast %261 : f32 to vector<2x128xf32>
    %263 = arith.mulf %260, %262 : vector<2x128xf32>
    %264 = arith.addf %258, %263 : vector<2x128xf32>
    %265 = vector.extract_strided_slice %3 {offsets = [2, 0, 0], sizes = [1, 2, 128], strides = [1, 1, 1]} : vector<4x2x128xf32> to vector<1x2x128xf32>
    %266 = vector.shape_cast %265 : vector<1x2x128xf32> to vector<2x128xf32>
    %c18_38 = arith.constant 18 : index
    %267 = memref.load %arg5[%c18_38] : memref<32xf32, #tpu.memory_space<smem>>
    %268 = vector.broadcast %267 : f32 to vector<2x128xf32>
    %269 = arith.mulf %266, %268 : vector<2x128xf32>
    %270 = arith.addf %264, %269 : vector<2x128xf32>
    %271 = vector.extract_strided_slice %3 {offsets = [3, 0, 0], sizes = [1, 2, 128], strides = [1, 1, 1]} : vector<4x2x128xf32> to vector<1x2x128xf32>
    %272 = vector.shape_cast %271 : vector<1x2x128xf32> to vector<2x128xf32>
    %c19_39 = arith.constant 19 : index
    %273 = memref.load %arg5[%c19_39] : memref<32xf32, #tpu.memory_space<smem>>
    %274 = vector.broadcast %273 : f32 to vector<2x128xf32>
    %275 = arith.mulf %272, %274 : vector<2x128xf32>
    %276 = arith.addf %270, %275 : vector<2x128xf32>
    %cst_40 = arith.constant 0.000000e+00 : f32
    %277 = vector.broadcast %cst_40 : f32 to vector<2x128xf32>
    %278 = arith.maximumf %276, %277 : vector<2x128xf32>
    %c4_41 = arith.constant 4 : index
    %279 = memref.load %arg7[%c4_41] : memref<8xf32, #tpu.memory_space<smem>>
    %280 = vector.broadcast %279 : f32 to vector<2x128xf32>
    %281 = arith.mulf %278, %280 : vector<2x128xf32>
    %282 = arith.addf %226, %281 : vector<2x128xf32>
    %283 = vector.extract_strided_slice %1 {offsets = [0, 0, 0], sizes = [1, 2, 128], strides = [1, 1, 1]} : vector<4x2x128xf32> to vector<1x2x128xf32>
    %284 = vector.shape_cast %283 : vector<1x2x128xf32> to vector<2x128xf32>
    %c20 = arith.constant 20 : index
    %285 = memref.load %arg4[%c20] : memref<32xf32, #tpu.memory_space<smem>>
    %286 = vector.broadcast %285 : f32 to vector<2x128xf32>
    %287 = arith.mulf %284, %286 : vector<2x128xf32>
    %c5_42 = arith.constant 5 : index
    %288 = memref.load %arg6[%c5_42] : memref<8xf32, #tpu.memory_space<smem>>
    %289 = vector.broadcast %288 : f32 to vector<2x128xf32>
    %290 = arith.addf %287, %289 : vector<2x128xf32>
    %291 = vector.extract_strided_slice %1 {offsets = [1, 0, 0], sizes = [1, 2, 128], strides = [1, 1, 1]} : vector<4x2x128xf32> to vector<1x2x128xf32>
    %292 = vector.shape_cast %291 : vector<1x2x128xf32> to vector<2x128xf32>
    %c21 = arith.constant 21 : index
    %293 = memref.load %arg4[%c21] : memref<32xf32, #tpu.memory_space<smem>>
    %294 = vector.broadcast %293 : f32 to vector<2x128xf32>
    %295 = arith.mulf %292, %294 : vector<2x128xf32>
    %296 = arith.addf %290, %295 : vector<2x128xf32>
    %297 = vector.extract_strided_slice %1 {offsets = [2, 0, 0], sizes = [1, 2, 128], strides = [1, 1, 1]} : vector<4x2x128xf32> to vector<1x2x128xf32>
    %298 = vector.shape_cast %297 : vector<1x2x128xf32> to vector<2x128xf32>
    %c22 = arith.constant 22 : index
    %299 = memref.load %arg4[%c22] : memref<32xf32, #tpu.memory_space<smem>>
    %300 = vector.broadcast %299 : f32 to vector<2x128xf32>
    %301 = arith.mulf %298, %300 : vector<2x128xf32>
    %302 = arith.addf %296, %301 : vector<2x128xf32>
    %303 = vector.extract_strided_slice %1 {offsets = [3, 0, 0], sizes = [1, 2, 128], strides = [1, 1, 1]} : vector<4x2x128xf32> to vector<1x2x128xf32>
    %304 = vector.shape_cast %303 : vector<1x2x128xf32> to vector<2x128xf32>
    %c23 = arith.constant 23 : index
    %305 = memref.load %arg4[%c23] : memref<32xf32, #tpu.memory_space<smem>>
    %306 = vector.broadcast %305 : f32 to vector<2x128xf32>
    %307 = arith.mulf %304, %306 : vector<2x128xf32>
    %308 = arith.addf %302, %307 : vector<2x128xf32>
    %309 = vector.extract_strided_slice %3 {offsets = [0, 0, 0], sizes = [1, 2, 128], strides = [1, 1, 1]} : vector<4x2x128xf32> to vector<1x2x128xf32>
    %310 = vector.shape_cast %309 : vector<1x2x128xf32> to vector<2x128xf32>
    %c20_43 = arith.constant 20 : index
    %311 = memref.load %arg5[%c20_43] : memref<32xf32, #tpu.memory_space<smem>>
    %312 = vector.broadcast %311 : f32 to vector<2x128xf32>
    %313 = arith.mulf %310, %312 : vector<2x128xf32>
    %314 = arith.addf %308, %313 : vector<2x128xf32>
    %315 = vector.extract_strided_slice %3 {offsets = [1, 0, 0], sizes = [1, 2, 128], strides = [1, 1, 1]} : vector<4x2x128xf32> to vector<1x2x128xf32>
    %316 = vector.shape_cast %315 : vector<1x2x128xf32> to vector<2x128xf32>
    %c21_44 = arith.constant 21 : index
    %317 = memref.load %arg5[%c21_44] : memref<32xf32, #tpu.memory_space<smem>>
    %318 = vector.broadcast %317 : f32 to vector<2x128xf32>
    %319 = arith.mulf %316, %318 : vector<2x128xf32>
    %320 = arith.addf %314, %319 : vector<2x128xf32>
    %321 = vector.extract_strided_slice %3 {offsets = [2, 0, 0], sizes = [1, 2, 128], strides = [1, 1, 1]} : vector<4x2x128xf32> to vector<1x2x128xf32>
    %322 = vector.shape_cast %321 : vector<1x2x128xf32> to vector<2x128xf32>
    %c22_45 = arith.constant 22 : index
    %323 = memref.load %arg5[%c22_45] : memref<32xf32, #tpu.memory_space<smem>>
    %324 = vector.broadcast %323 : f32 to vector<2x128xf32>
    %325 = arith.mulf %322, %324 : vector<2x128xf32>
    %326 = arith.addf %320, %325 : vector<2x128xf32>
    %327 = vector.extract_strided_slice %3 {offsets = [3, 0, 0], sizes = [1, 2, 128], strides = [1, 1, 1]} : vector<4x2x128xf32> to vector<1x2x128xf32>
    %328 = vector.shape_cast %327 : vector<1x2x128xf32> to vector<2x128xf32>
    %c23_46 = arith.constant 23 : index
    %329 = memref.load %arg5[%c23_46] : memref<32xf32, #tpu.memory_space<smem>>
    %330 = vector.broadcast %329 : f32 to vector<2x128xf32>
    %331 = arith.mulf %328, %330 : vector<2x128xf32>
    %332 = arith.addf %326, %331 : vector<2x128xf32>
    %cst_47 = arith.constant 0.000000e+00 : f32
    %333 = vector.broadcast %cst_47 : f32 to vector<2x128xf32>
    %334 = arith.maximumf %332, %333 : vector<2x128xf32>
    %c5_48 = arith.constant 5 : index
    %335 = memref.load %arg7[%c5_48] : memref<8xf32, #tpu.memory_space<smem>>
    %336 = vector.broadcast %335 : f32 to vector<2x128xf32>
    %337 = arith.mulf %334, %336 : vector<2x128xf32>
    %338 = arith.addf %282, %337 : vector<2x128xf32>
    %339 = vector.extract_strided_slice %1 {offsets = [0, 0, 0], sizes = [1, 2, 128], strides = [1, 1, 1]} : vector<4x2x128xf32> to vector<1x2x128xf32>
    %340 = vector.shape_cast %339 : vector<1x2x128xf32> to vector<2x128xf32>
    %c24 = arith.constant 24 : index
    %341 = memref.load %arg4[%c24] : memref<32xf32, #tpu.memory_space<smem>>
    %342 = vector.broadcast %341 : f32 to vector<2x128xf32>
    %343 = arith.mulf %340, %342 : vector<2x128xf32>
    %c6_49 = arith.constant 6 : index
    %344 = memref.load %arg6[%c6_49] : memref<8xf32, #tpu.memory_space<smem>>
    %345 = vector.broadcast %344 : f32 to vector<2x128xf32>
    %346 = arith.addf %343, %345 : vector<2x128xf32>
    %347 = vector.extract_strided_slice %1 {offsets = [1, 0, 0], sizes = [1, 2, 128], strides = [1, 1, 1]} : vector<4x2x128xf32> to vector<1x2x128xf32>
    %348 = vector.shape_cast %347 : vector<1x2x128xf32> to vector<2x128xf32>
    %c25 = arith.constant 25 : index
    %349 = memref.load %arg4[%c25] : memref<32xf32, #tpu.memory_space<smem>>
    %350 = vector.broadcast %349 : f32 to vector<2x128xf32>
    %351 = arith.mulf %348, %350 : vector<2x128xf32>
    %352 = arith.addf %346, %351 : vector<2x128xf32>
    %353 = vector.extract_strided_slice %1 {offsets = [2, 0, 0], sizes = [1, 2, 128], strides = [1, 1, 1]} : vector<4x2x128xf32> to vector<1x2x128xf32>
    %354 = vector.shape_cast %353 : vector<1x2x128xf32> to vector<2x128xf32>
    %c26 = arith.constant 26 : index
    %355 = memref.load %arg4[%c26] : memref<32xf32, #tpu.memory_space<smem>>
    %356 = vector.broadcast %355 : f32 to vector<2x128xf32>
    %357 = arith.mulf %354, %356 : vector<2x128xf32>
    %358 = arith.addf %352, %357 : vector<2x128xf32>
    %359 = vector.extract_strided_slice %1 {offsets = [3, 0, 0], sizes = [1, 2, 128], strides = [1, 1, 1]} : vector<4x2x128xf32> to vector<1x2x128xf32>
    %360 = vector.shape_cast %359 : vector<1x2x128xf32> to vector<2x128xf32>
    %c27 = arith.constant 27 : index
    %361 = memref.load %arg4[%c27] : memref<32xf32, #tpu.memory_space<smem>>
    %362 = vector.broadcast %361 : f32 to vector<2x128xf32>
    %363 = arith.mulf %360, %362 : vector<2x128xf32>
    %364 = arith.addf %358, %363 : vector<2x128xf32>
    %365 = vector.extract_strided_slice %3 {offsets = [0, 0, 0], sizes = [1, 2, 128], strides = [1, 1, 1]} : vector<4x2x128xf32> to vector<1x2x128xf32>
    %366 = vector.shape_cast %365 : vector<1x2x128xf32> to vector<2x128xf32>
    %c24_50 = arith.constant 24 : index
    %367 = memref.load %arg5[%c24_50] : memref<32xf32, #tpu.memory_space<smem>>
    %368 = vector.broadcast %367 : f32 to vector<2x128xf32>
    %369 = arith.mulf %366, %368 : vector<2x128xf32>
    %370 = arith.addf %364, %369 : vector<2x128xf32>
    %371 = vector.extract_strided_slice %3 {offsets = [1, 0, 0], sizes = [1, 2, 128], strides = [1, 1, 1]} : vector<4x2x128xf32> to vector<1x2x128xf32>
    %372 = vector.shape_cast %371 : vector<1x2x128xf32> to vector<2x128xf32>
    %c25_51 = arith.constant 25 : index
    %373 = memref.load %arg5[%c25_51] : memref<32xf32, #tpu.memory_space<smem>>
    %374 = vector.broadcast %373 : f32 to vector<2x128xf32>
    %375 = arith.mulf %372, %374 : vector<2x128xf32>
    %376 = arith.addf %370, %375 : vector<2x128xf32>
    %377 = vector.extract_strided_slice %3 {offsets = [2, 0, 0], sizes = [1, 2, 128], strides = [1, 1, 1]} : vector<4x2x128xf32> to vector<1x2x128xf32>
    %378 = vector.shape_cast %377 : vector<1x2x128xf32> to vector<2x128xf32>
    %c26_52 = arith.constant 26 : index
    %379 = memref.load %arg5[%c26_52] : memref<32xf32, #tpu.memory_space<smem>>
    %380 = vector.broadcast %379 : f32 to vector<2x128xf32>
    %381 = arith.mulf %378, %380 : vector<2x128xf32>
    %382 = arith.addf %376, %381 : vector<2x128xf32>
    %383 = vector.extract_strided_slice %3 {offsets = [3, 0, 0], sizes = [1, 2, 128], strides = [1, 1, 1]} : vector<4x2x128xf32> to vector<1x2x128xf32>
    %384 = vector.shape_cast %383 : vector<1x2x128xf32> to vector<2x128xf32>
    %c27_53 = arith.constant 27 : index
    %385 = memref.load %arg5[%c27_53] : memref<32xf32, #tpu.memory_space<smem>>
    %386 = vector.broadcast %385 : f32 to vector<2x128xf32>
    %387 = arith.mulf %384, %386 : vector<2x128xf32>
    %388 = arith.addf %382, %387 : vector<2x128xf32>
    %cst_54 = arith.constant 0.000000e+00 : f32
    %389 = vector.broadcast %cst_54 : f32 to vector<2x128xf32>
    %390 = arith.maximumf %388, %389 : vector<2x128xf32>
    %c6_55 = arith.constant 6 : index
    %391 = memref.load %arg7[%c6_55] : memref<8xf32, #tpu.memory_space<smem>>
    %392 = vector.broadcast %391 : f32 to vector<2x128xf32>
    %393 = arith.mulf %390, %392 : vector<2x128xf32>
    %394 = arith.addf %338, %393 : vector<2x128xf32>
    %395 = vector.extract_strided_slice %1 {offsets = [0, 0, 0], sizes = [1, 2, 128], strides = [1, 1, 1]} : vector<4x2x128xf32> to vector<1x2x128xf32>
    %396 = vector.shape_cast %395 : vector<1x2x128xf32> to vector<2x128xf32>
    %c28 = arith.constant 28 : index
    %397 = memref.load %arg4[%c28] : memref<32xf32, #tpu.memory_space<smem>>
    %398 = vector.broadcast %397 : f32 to vector<2x128xf32>
    %399 = arith.mulf %396, %398 : vector<2x128xf32>
    %c7_56 = arith.constant 7 : index
    %400 = memref.load %arg6[%c7_56] : memref<8xf32, #tpu.memory_space<smem>>
    %401 = vector.broadcast %400 : f32 to vector<2x128xf32>
    %402 = arith.addf %399, %401 : vector<2x128xf32>
    %403 = vector.extract_strided_slice %1 {offsets = [1, 0, 0], sizes = [1, 2, 128], strides = [1, 1, 1]} : vector<4x2x128xf32> to vector<1x2x128xf32>
    %404 = vector.shape_cast %403 : vector<1x2x128xf32> to vector<2x128xf32>
    %c29 = arith.constant 29 : index
    %405 = memref.load %arg4[%c29] : memref<32xf32, #tpu.memory_space<smem>>
    %406 = vector.broadcast %405 : f32 to vector<2x128xf32>
    %407 = arith.mulf %404, %406 : vector<2x128xf32>
    %408 = arith.addf %402, %407 : vector<2x128xf32>
    %409 = vector.extract_strided_slice %1 {offsets = [2, 0, 0], sizes = [1, 2, 128], strides = [1, 1, 1]} : vector<4x2x128xf32> to vector<1x2x128xf32>
    %410 = vector.shape_cast %409 : vector<1x2x128xf32> to vector<2x128xf32>
    %c30 = arith.constant 30 : index
    %411 = memref.load %arg4[%c30] : memref<32xf32, #tpu.memory_space<smem>>
    %412 = vector.broadcast %411 : f32 to vector<2x128xf32>
    %413 = arith.mulf %410, %412 : vector<2x128xf32>
    %414 = arith.addf %408, %413 : vector<2x128xf32>
    %415 = vector.extract_strided_slice %1 {offsets = [3, 0, 0], sizes = [1, 2, 128], strides = [1, 1, 1]} : vector<4x2x128xf32> to vector<1x2x128xf32>
    %416 = vector.shape_cast %415 : vector<1x2x128xf32> to vector<2x128xf32>
    %c31 = arith.constant 31 : index
    %417 = memref.load %arg4[%c31] : memref<32xf32, #tpu.memory_space<smem>>
    %418 = vector.broadcast %417 : f32 to vector<2x128xf32>
    %419 = arith.mulf %416, %418 : vector<2x128xf32>
    %420 = arith.addf %414, %419 : vector<2x128xf32>
    %421 = vector.extract_strided_slice %3 {offsets = [0, 0, 0], sizes = [1, 2, 128], strides = [1, 1, 1]} : vector<4x2x128xf32> to vector<1x2x128xf32>
    %422 = vector.shape_cast %421 : vector<1x2x128xf32> to vector<2x128xf32>
    %c28_57 = arith.constant 28 : index
    %423 = memref.load %arg5[%c28_57] : memref<32xf32, #tpu.memory_space<smem>>
    %424 = vector.broadcast %423 : f32 to vector<2x128xf32>
    %425 = arith.mulf %422, %424 : vector<2x128xf32>
    %426 = arith.addf %420, %425 : vector<2x128xf32>
    %427 = vector.extract_strided_slice %3 {offsets = [1, 0, 0], sizes = [1, 2, 128], strides = [1, 1, 1]} : vector<4x2x128xf32> to vector<1x2x128xf32>
    %428 = vector.shape_cast %427 : vector<1x2x128xf32> to vector<2x128xf32>
    %c29_58 = arith.constant 29 : index
    %429 = memref.load %arg5[%c29_58] : memref<32xf32, #tpu.memory_space<smem>>
    %430 = vector.broadcast %429 : f32 to vector<2x128xf32>
    %431 = arith.mulf %428, %430 : vector<2x128xf32>
    %432 = arith.addf %426, %431 : vector<2x128xf32>
    %433 = vector.extract_strided_slice %3 {offsets = [2, 0, 0], sizes = [1, 2, 128], strides = [1, 1, 1]} : vector<4x2x128xf32> to vector<1x2x128xf32>
    %434 = vector.shape_cast %433 : vector<1x2x128xf32> to vector<2x128xf32>
    %c30_59 = arith.constant 30 : index
    %435 = memref.load %arg5[%c30_59] : memref<32xf32, #tpu.memory_space<smem>>
    %436 = vector.broadcast %435 : f32 to vector<2x128xf32>
    %437 = arith.mulf %434, %436 : vector<2x128xf32>
    %438 = arith.addf %432, %437 : vector<2x128xf32>
    %439 = vector.extract_strided_slice %3 {offsets = [3, 0, 0], sizes = [1, 2, 128], strides = [1, 1, 1]} : vector<4x2x128xf32> to vector<1x2x128xf32>
    %440 = vector.shape_cast %439 : vector<1x2x128xf32> to vector<2x128xf32>
    %c31_60 = arith.constant 31 : index
    %441 = memref.load %arg5[%c31_60] : memref<32xf32, #tpu.memory_space<smem>>
    %442 = vector.broadcast %441 : f32 to vector<2x128xf32>
    %443 = arith.mulf %440, %442 : vector<2x128xf32>
    %444 = arith.addf %438, %443 : vector<2x128xf32>
    %cst_61 = arith.constant 0.000000e+00 : f32
    %445 = vector.broadcast %cst_61 : f32 to vector<2x128xf32>
    %446 = arith.maximumf %444, %445 : vector<2x128xf32>
    %c7_62 = arith.constant 7 : index
    %447 = memref.load %arg7[%c7_62] : memref<8xf32, #tpu.memory_space<smem>>
    %448 = vector.broadcast %447 : f32 to vector<2x128xf32>
    %449 = arith.mulf %446, %448 : vector<2x128xf32>
    %450 = arith.addf %394, %449 : vector<2x128xf32>
    %c0_63 = arith.constant 0 : index
    %451 = memref.load %arg8[%c0_63] : memref<1xf32, #tpu.memory_space<smem>>
    %452 = vector.broadcast %451 : f32 to vector<2x128xf32>
    %453 = arith.addf %450, %452 : vector<2x128xf32>
    %454 = arith.negf %453 : vector<2x128xf32>
    %455 = math.exp %454 : vector<2x128xf32>
    %cst_64 = arith.constant 1.000000e+00 : f32
    %456 = vector.broadcast %cst_64 : f32 to vector<2x128xf32>
    %457 = arith.addf %456, %455 : vector<2x128xf32>
    %458 = arith.divf %456, %457 : vector<2x128xf32>
    %459 = vector.shape_cast %458 : vector<2x128xf32> to vector<1x2x128xf32>
    %460 = vector.broadcast %459 : vector<1x2x128xf32> to vector<4x2x128xf32>
    %461 = arith.mulf %3, %460 : vector<4x2x128xf32>
    %c0_65 = arith.constant 0 : index
    %c0_66 = arith.constant 0 : index
    %c0_67 = arith.constant 0 : index
    %c0_68 = arith.constant 0 : index
    %462 = vector.load %arg9[%c0_65, %c0_66, %c0_67, %c0_68] : memref<1x4x2x128xf32, #tpu.memory_space<vmem>>, vector<1x4x2x128xf32>
    %463 = vector.shape_cast %462 : vector<1x4x2x128xf32> to vector<4x2x128xf32>
    %464 = vector.shape_cast %461 : vector<4x2x128xf32> to vector<1x4x2x128xf32>
    tpu.vector_store %arg9[%c0_65, %c0_66, %c0_67, %c0_68], %464 {strides = array<i32>} : memref<1x4x2x128xf32, #tpu.memory_space<vmem>>, vector<1x4x2x128xf32>,
    return
  }
  func.func @transform_0(%arg0: i32, %arg1: i32) -> (i32, i32, i32, i32) {
    %c0_i32 = arith.constant 0 : i32
    %c0_i32_0 = arith.constant 0 : i32
    %c0_i32_1 = arith.constant 0 : i32
    return %arg0, %c0_i32, %arg1, %c0_i32_0 : i32, i32, i32, i32
  }
  func.func @transform_1(%arg0: i32, %arg1: i32) -> (i32, i32, i32, i32) {
    %c0_i32 = arith.constant 0 : i32
    %c0_i32_0 = arith.constant 0 : i32
    %c0_i32_1 = arith.constant 0 : i32
    return %arg0, %c0_i32, %arg1, %c0_i32_0 : i32, i32, i32, i32
  }
  func.func @transform_2(%arg0: i32, %arg1: i32) -> i32 {
    %c0_i32 = arith.constant 0 : i32
    %c0_i32_0 = arith.constant 0 : i32
    return %c0_i32 : i32
  }
  func.func @transform_3(%arg0: i32, %arg1: i32) -> i32 {
    %c0_i32 = arith.constant 0 : i32
    %c0_i32_0 = arith.constant 0 : i32
    return %c0_i32 : i32
  }
  func.func @transform_4(%arg0: i32, %arg1: i32) -> i32 {
    %c0_i32 = arith.constant 0 : i32
    %c0_i32_0 = arith.constant 0 : i32
    return %c0_i32 : i32
  }
  func.func @transform_5(%arg0: i32, %arg1: i32) -> i32 {
    %c0_i32 = arith.constant 0 : i32
    %c0_i32_0 = arith.constant 0 : i32
    return %c0_i32 : i32
  }
  func.func @transform_6(%arg0: i32, %arg1: i32) -> i32 {
    %c0_i32 = arith.constant 0 : i32
    %c0_i32_0 = arith.constant 0 : i32
    return %c0_i32 : i32
  }
  func.func @transform_7(%arg0: i32, %arg1: i32) -> (i32, i32, i32, i32) {
    %c0_i32 = arith.constant 0 : i32
    %c0_i32_0 = arith.constant 0 : i32
    %c0_i32_1 = arith.constant 0 : i32
    return %arg0, %c0_i32, %arg1, %c0_i32_0 : i32, i32, i32, i32
  }
}

</mosaic_0001>

<llo_original>
// kernel: tpu_custom_call.1
$region0: #{tpu_custom_call.1}
  #allocation0 [shape = 'u32[]', space=smem, size = 0x4, offset = 0x4, fixed_abs, tag = 'smem constant byte address 0x4 - core index']
  #allocation1 [shape = 'u32[144,128]{1,0:T(1,128)}', space=vmem, size = 0x12000, scoped, tag = 'internal scratch']
  #allocation2 [shape = 'f32[1]{0:T(128)S(6)}', space=smem, size = 0x200, scoped, tag = 'scoped memory for tpu_custom_call.1']
  %s0 = inlined_call_operand.hbm [shape: f32[2,4,2,128], index: 0, kind: input, shape index: {}]
  %s1 = inlined_call_operand.hbm [shape: f32[2,4,2,128], index: 1, kind: input, shape index: {}]
  %s2 = inlined_call_operand.vmem [shape: f32[32], index: 2, kind: input, shape index: {}]
  %s3 = inlined_call_operand.vmem [shape: f32[32], index: 3, kind: input, shape index: {}]
  %s4 = inlined_call_operand.vmem [shape: f32[8], index: 4, kind: input, shape index: {}]
  %s5 = inlined_call_operand.vmem [shape: f32[8], index: 5, kind: input, shape index: {}]
  %s6 = inlined_call_operand.<no memory space> [shape: f32[1], index: 6, kind: input, shape index: {}]
  %s7 = inlined_call_operand.hbm [shape: f32[2,4,2,128], index: 7, kind: output, shape index: {}]
  %s8 = sld [smem:[#allocation0]]
  $region85: #{tpu_custom_call.1} parent=0
    _
  %s10 = ssub.s32 1, %s8
  %s11 = scalar_select 0, %s10, %s8
  %12 = sst [smem:[#allocation2]] %s6
  $region1: #{tpu_custom_call.1} parent=0
    #allocation3 [shape = 'u8[8192]{0}', space=vmem, size = 0x2000, scoped, tag = 'input window, operand 0']
    #allocation4 [shape = 's32[2]{0}', space=sflag, size = 0x8, scoped, tag = 'scoped memory for tpu_custom_call.1']
    #allocation5 [shape = 's32[2]{0}', space=sflag, size = 0x8, scoped, tag = 'scoped memory for tpu_custom_call.1']
    #allocation6 [shape = 's32[2]{0}', space=sflag, size = 0x8, scoped, tag = 'scoped memory for tpu_custom_call.1']
    #allocation7 [shape = 'u8[8192]{0}', space=vmem, size = 0x2000, scoped, tag = 'input window, operand 1']
    #allocation8 [shape = 's32[2]{0}', space=sflag, size = 0x8, scoped, tag = 'scoped memory for tpu_custom_call.1']
    #allocation9 [shape = 'u8[512]{0}', space=smem, size = 0x200, scoped, tag = 'input window, operand 2, single buffered']
    #allocation10 [shape = 'u8[512]{0}', space=smem, size = 0x200, scoped, tag = 'input window, operand 3, single buffered']
    #allocation11 [shape = 's32[1]{0}', space=sflag, size = 0x4, scoped, tag = 'scoped memory for tpu_custom_call.1']
    #allocation12 [shape = 'u8[512]{0}', space=smem, size = 0x200, scoped, tag = 'input window, operand 4, single buffered']
    #allocation13 [shape = 'u8[512]{0}', space=smem, size = 0x200, scoped, tag = 'input window, operand 5, single buffered']
    #allocation14 [shape = 's32[1]{0}', space=sflag, size = 0x4, scoped, tag = 'scoped memory for tpu_custom_call.1']
    #allocation15 [shape = 'u8[8192]{0}', space=vmem, size = 0x2000, scoped, tag = 'output window, operand 0']
    %13 = vsyncpa [#allocation4], 0
    %s14 = scalar_lea.sflag [#allocation4], 1
    %15 = vsyncpa %s14, 0
    %16 = vsyncpa [#allocation8], 0
    %s17 = scalar_lea.sflag [#allocation8], 1
    %18 = vsyncpa %s17, 0
    %19 = vsyncpa [#allocation6], 0
    %20 = vsyncpa [#allocation11], 0
    %21 = vsyncpa [#allocation14], 0
    %22 = vsyncpa [#allocation5], 0
    %s23 = scalar_lea.sflag [#allocation5], 1
    %24 = vsyncpa %s23, 0
    loop: start=0, step=1, limit=4
    $region2: #{tpu_custom_call.1} parent=1 // loop_pre_header
      _
    $region3: #{tpu_custom_call.1} parent=1 // loop_header
      %s26 = sphi 0, %s30
      %p27 = scmp.ge.s32.totalorder %s26, 4
      %s33 = sphi 0, %s45
      %s34 = sphi 0, %s41
      %s35 = sphi 0, %s33
      %s36 = sphi 0, %s34
      %s37 = sphi 0, %s35
      %s38 = sphi 0, %s36
      %s50 = sphi 0, %s52
      %s53 = sphi 0, %s50
      %s54 = sphi 0, %s53
      %s70 = sphi 0, %s54
      %s78 = sphi 0, %s80
      %s81 = sphi 0, %s78
      %s82 = sphi 0, %s81
      %s98 = sphi 0, %s82
      %s102 = sphi 0, %s102
      %s104 = sphi 0, %s102
      %s105 = sphi 0, %s104
      %s119 = sphi 0, %s105
      %s123 = sphi 0, %s123
      %s125 = sphi 0, %s123
      %s126 = sphi 0, %s125
      %s140 = sphi 0, %s126
      %s144 = sphi 0, %s144
      %s146 = sphi 0, %s144
      %s147 = sphi 0, %s146
      %s161 = sphi 0, %s147
      %s165 = sphi 0, %s165
      %s167 = sphi 0, %s165
      %s168 = sphi 0, %s167
      %s182 = sphi 0, %s168
      %s186 = sphi 0, %s186
      %s188 = sphi 0, %s186
      %s189 = sphi 0, %s188
      %s203 = sphi 0, %s189
      %s211 = sphi 0, %s213
      %s214 = sphi 0, %s211
      %s215 = sphi 0, %s214
      %s231 = sphi 0, %s215
    $region4: #{tpu_custom_call.1} parent=1 // loop_header_branch
      %29 = sbr.rel (%p27) target = $region8
    $region5: #{tpu_custom_call.1} parent=1 // loop_body
      %s31 = ssub.s32 %s26, 1
      %s32 = ssub.s32 %s26, 2
      %s39 = sadd.s32 1, %s34
      %p40 = scmp.ge.s32.totalorder %s39, 1
      %s41 = scalar_select %p40, 0, %s39
      %s42 = sadd.s32 1, %s33
      %s43 = scalar_select %p40, %s42, %s33
      %p44 = scmp.ge.s32.totalorder %s43, 2
      %s45 = scalar_select %p44, 0, %s43
      %s46 = ssub.s32 %s33, %s45
      %s47 = ssub.s32 %s34, %s41
      %s48 = sor.u32 %s46, %s47
      %p49 = scmp.eq.s32.totalorder %s48, 0
      %s51 = sadd.s32 %s50, 1
      %s52 = scalar_select %p49, %s50, %s51
      %p55 = pneg %p49
      %p56 = scmp.eq.s32.totalorder %s26, 1
      %p57 = por %p55, %p56
      %p58 = scmp.ne.s32.totalorder %s50, %s53
      %p59 = scmp.eq.s32.totalorder %s26, 0
      %p60 = por %p58, %p59
      %p61 = scmp.ne.s32.totalorder %s50, %s53
      %p62 = scmp.eq.s32.totalorder %s31, 1
      %p63 = por %p61, %p62
      %p64 = scmp.ne.s32.totalorder %s53, %s54
      %p65 = scmp.eq.s32.totalorder %s31, 0
      %p66 = por %p64, %p65
      %p67 = scmp.ne.s32.totalorder %s53, %s54
      %p68 = scmp.eq.s32.totalorder %s32, 1
      %p69 = por %p67, %p68
      %p71 = scmp.ne.s32.totalorder %s54, %s70
      %p72 = scmp.eq.s32.totalorder %s32, 0
      %p73 = por %p71, %p72
      %s74 = ssub.s32 %s33, %s45
      %s75 = ssub.s32 %s34, %s41
      %s76 = sor.u32 %s74, %s75
      %p77 = scmp.eq.s32.totalorder %s76, 0
      %s79 = sadd.s32 %s78, 1
      %s80 = scalar_select %p77, %s78, %s79
      %p83 = pneg %p77
      %p84 = scmp.eq.s32.totalorder %s26, 1
      %p85 = por %p83, %p84
      %p86 = scmp.ne.s32.totalorder %s78, %s81
      %p87 = scmp.eq.s32.totalorder %s26, 0
      %p88 = por %p86, %p87
      %p89 = scmp.ne.s32.totalorder %s78, %s81
      %p90 = scmp.eq.s32.totalorder %s31, 1
      %p91 = por %p89, %p90
      %p92 = scmp.ne.s32.totalorder %s81, %s82
      %p93 = scmp.eq.s32.totalorder %s31, 0
      %p94 = por %p92, %p93
      %p95 = scmp.ne.s32.totalorder %s81, %s82
      %p96 = scmp.eq.s32.totalorder %s32, 1
      %p97 = por %p95, %p96
      %p99 = scmp.ne.s32.totalorder %s82, %s98
      %p100 = scmp.eq.s32.totalorder %s32, 0
      %p101 = por %p99, %p100
      %s103 = sadd.s32 %s102, 1
      %p106 = scmp.eq.s32.totalorder %s26, 1
      %p107 = scmp.ne.s32.totalorder %s102, %s104
      %p108 = scmp.eq.s32.totalorder %s26, 0
      %p109 = por %p107, %p108
      %p110 = scmp.ne.s32.totalorder %s102, %s104
      %p111 = scmp.eq.s32.totalorder %s31, 1
      %p112 = por %p110, %p111
      %p113 = scmp.ne.s32.totalorder %s104, %s105
      %p114 = scmp.eq.s32.totalorder %s31, 0
      %p115 = por %p113, %p114
      %p116 = scmp.ne.s32.totalorder %s104, %s105
      %p117 = scmp.eq.s32.totalorder %s32, 1
      %p118 = por %p116, %p117
      %p120 = scmp.ne.s32.totalorder %s105, %s119
      %p121 = scmp.eq.s32.totalorder %s32, 0
      %p122 = por %p120, %p121
      %s124 = sadd.s32 %s123, 1
      %p127 = scmp.eq.s32.totalorder %s26, 1
      %p128 = scmp.ne.s32.totalorder %s123, %s125
      %p129 = scmp.eq.s32.totalorder %s26, 0
      %p130 = por %p128, %p129
      %p131 = scmp.ne.s32.totalorder %s123, %s125
      %p132 = scmp.eq.s32.totalorder %s31, 1
      %p133 = por %p131, %p132
      %p134 = scmp.ne.s32.totalorder %s125, %s126
      %p135 = scmp.eq.s32.totalorder %s31, 0
      %p136 = por %p134, %p135
      %p137 = scmp.ne.s32.totalorder %s125, %s126
      %p138 = scmp.eq.s32.totalorder %s32, 1
      %p139 = por %p137, %p138
      %p141 = scmp.ne.s32.totalorder %s126, %s140
      %p142 = scmp.eq.s32.totalorder %s32, 0
      %p143 = por %p141, %p142
      %s145 = sadd.s32 %s144, 1
      %p148 = scmp.eq.s32.totalorder %s26, 1
      %p149 = scmp.ne.s32.totalorder %s144, %s146
      %p150 = scmp.eq.s32.totalorder %s26, 0
      %p151 = por %p149, %p150
      %p152 = scmp.ne.s32.totalorder %s144, %s146
      %p153 = scmp.eq.s32.totalorder %s31, 1
      %p154 = por %p152, %p153
      %p155 = scmp.ne.s32.totalorder %s146, %s147
      %p156 = scmp.eq.s32.totalorder %s31, 0
      %p157 = por %p155, %p156
      %p158 = scmp.ne.s32.totalorder %s146, %s147
      %p159 = scmp.eq.s32.totalorder %s32, 1
      %p160 = por %p158, %p159
      %p162 = scmp.ne.s32.totalorder %s147, %s161
      %p163 = scmp.eq.s32.totalorder %s32, 0
      %p164 = por %p162, %p163
      %s166 = sadd.s32 %s165, 1
      %p169 = scmp.eq.s32.totalorder %s26, 1
      %p170 = scmp.ne.s32.totalorder %s165, %s167
      %p171 = scmp.eq.s32.totalorder %s26, 0
      %p172 = por %p170, %p171
      %p173 = scmp.ne.s32.totalorder %s165, %s167
      %p174 = scmp.eq.s32.totalorder %s31, 1
      %p175 = por %p173, %p174
      %p176 = scmp.ne.s32.totalorder %s167, %s168
      %p177 = scmp.eq.s32.totalorder %s31, 0
      %p178 = por %p176, %p177
      %p179 = scmp.ne.s32.totalorder %s167, %s168
      %p180 = scmp.eq.s32.totalorder %s32, 1
      %p181 = por %p179, %p180
      %p183 = scmp.ne.s32.totalorder %s168, %s182
      %p184 = scmp.eq.s32.totalorder %s32, 0
      %p185 = por %p183, %p184
      %s187 = sadd.s32 %s186, 1
      %p190 = scmp.eq.s32.totalorder %s26, 1
      %p191 = scmp.ne.s32.totalorder %s186, %s188
      %p192 = scmp.eq.s32.totalorder %s26, 0
      %p193 = por %p191, %p192
      %p194 = scmp.ne.s32.totalorder %s186, %s188
      %p195 = scmp.eq.s32.totalorder %s31, 1
      %p196 = por %p194, %p195
      %p197 = scmp.ne.s32.totalorder %s188, %s189
      %p198 = scmp.eq.s32.totalorder %s31, 0
      %p199 = por %p197, %p198
      %p200 = scmp.ne.s32.totalorder %s188, %s189
      %p201 = scmp.eq.s32.totalorder %s32, 1
      %p202 = por %p200, %p201
      %p204 = scmp.ne.s32.totalorder %s189, %s203
      %p205 = scmp.eq.s32.totalorder %s32, 0
      %p206 = por %p204, %p205
      %s207 = ssub.s32 %s33, %s45
      %s208 = ssub.s32 %s34, %s41
      %s209 = sor.u32 %s207, %s208
      %p210 = scmp.eq.s32.totalorder %s209, 0
      %s212 = sadd.s32 %s211, 1
      %s213 = scalar_select %p210, %s211, %s212
      %p216 = pneg %p210
      %p217 = scmp.eq.s32.totalorder %s26, 1
      %p218 = por %p216, %p217
      %p219 = scmp.ne.s32.totalorder %s211, %s214
      %p220 = scmp.eq.s32.totalorder %s26, 0
      %p221 = por %p219, %p220
      %p222 = scmp.ne.s32.totalorder %s211, %s214
      %p223 = scmp.eq.s32.totalorder %s31, 1
      %p224 = por %p222, %p223
      %p225 = scmp.ne.s32.totalorder %s214, %s215
      %p226 = scmp.eq.s32.totalorder %s31, 0
      %p227 = por %p225, %p226
      %p228 = scmp.ne.s32.totalorder %s214, %s215
      %p229 = scmp.eq.s32.totalorder %s32, 1
      %p230 = por %p228, %p229
      %p232 = scmp.ne.s32.totalorder %s215, %s231
      %p233 = scmp.eq.s32.totalorder %s32, 0
      %p234 = por %p232, %p233
      %p235 = scmp.le.s32.totalorder 1, %s26
      %p236 = scmp.lt.s32.totalorder %s26, 3
      %p237 = pnand %p235, %p236
      %p238 = pneg %p237
      // Predicated region
      $region9: #{tpu_custom_call.1} parent=5 // pred_check
        _
      $region10: #{tpu_custom_call.1} parent=5 // pred_check_branch
        %240 = sbr.rel (%p237) target = $region12
      $region11: #{tpu_custom_call.1} parent=5 // pred_region
        %s241 = ssub.s32 %s26, 1
        // Predicated region
        $region13: #{tpu_custom_call.1} parent=11 // pred_check
          %p242 = pneg %p115
        $region14: #{tpu_custom_call.1} parent=11 // pred_check_branch
          %244 = sbr.rel (%p242) target = $region16
        $region15: #{tpu_custom_call.1} parent=11 // pred_region
          %s246 = ssub.s32 16, 16
          %247 = vsyncadd [#allocation6], %s246
          %s249 = sshll.u32 %s2, 4
          %s250 = int_to_ptr.vmem [resolvable:$true] %s249
          %252 = dma.vmem_to_smem %s250, 16, [#allocation9], [#allocation6]
        $region16: #{tpu_custom_call.1} parent=11 // pred_fallthru
          _
        // Predicated region
        $region17: #{tpu_custom_call.1} parent=11 // pred_check
          %p253 = pneg %p136
        $region18: #{tpu_custom_call.1} parent=11 // pred_check_branch
          %255 = sbr.rel (%p253) target = $region20
        $region19: #{tpu_custom_call.1} parent=11 // pred_region
          %s257 = ssub.s32 16, 16
          %258 = vsyncadd [#allocation11], %s257
          %s260 = sshll.u32 %s3, 4
          %s261 = int_to_ptr.vmem [resolvable:$true] %s260
          %263 = dma.vmem_to_smem %s261, 16, [#allocation10], [#allocation11]
        $region20: #{tpu_custom_call.1} parent=11 // pred_fallthru
          _
        // Predicated region
        $region21: #{tpu_custom_call.1} parent=11 // pred_check
          %p264 = pneg %p157
        $region22: #{tpu_custom_call.1} parent=11 // pred_check_branch
          %266 = sbr.rel (%p264) target = $region24
        $region23: #{tpu_custom_call.1} parent=11 // pred_region
          %s268 = ssub.s32 16, 16
          %269 = vsyncadd [#allocation11], %s268
          %s271 = sshll.u32 %s4, 4
          %s272 = int_to_ptr.vmem [resolvable:$true] %s271
          %274 = dma.vmem_to_smem %s272, 16, [#allocation12], [#allocation11]
        $region24: #{tpu_custom_call.1} parent=11 // pred_fallthru
          _
        // Predicated region
        $region25: #{tpu_custom_call.1} parent=11 // pred_check
          %p275 = pneg %p178
        $region26: #{tpu_custom_call.1} parent=11 // pred_check_branch
          %277 = sbr.rel (%p275) target = $region28
        $region27: #{tpu_custom_call.1} parent=11 // pred_region
          %s279 = ssub.s32 16, 16
          %280 = vsyncadd [#allocation14], %s279
          %s282 = sshll.u32 %s5, 4
          %s283 = int_to_ptr.vmem [resolvable:$true] %s282
          %285 = dma.vmem_to_smem %s283, 16, [#allocation13], [#allocation14]
        $region28: #{tpu_custom_call.1} parent=11 // pred_fallthru
          _
        // Predicated region
        $region29: #{tpu_custom_call.1} parent=11 // pred_check
          %p286 = pneg %p199
        $region30: #{tpu_custom_call.1} parent=11 // pred_check_branch
          %288 = sbr.rel (%p286) target = $region32
        $region31: #{tpu_custom_call.1} parent=11 // pred_region
          _
        $region32: #{tpu_custom_call.1} parent=11 // pred_fallthru
          _
      $region12: #{tpu_custom_call.1} parent=5 // pred_fallthru
        _
      %p289 = scmp.lt.s32.totalorder %s26, 2
      // Predicated region
      $region33: #{tpu_custom_call.1} parent=5 // pred_check
        %p290 = pneg %p289
      $region34: #{tpu_custom_call.1} parent=5 // pred_check_branch
        %292 = sbr.rel (%p290) target = $region36
      $region35: #{tpu_custom_call.1} parent=5 // pred_region
        // Predicated region
        $region37: #{tpu_custom_call.1} parent=35 // pred_check
          %p293 = pneg %p60
        $region38: #{tpu_custom_call.1} parent=35 // pred_check_branch
          %295 = sbr.rel (%p293) target = $region40
        $region39: #{tpu_custom_call.1} parent=35 // pred_region
          %s296 = sand.u32 %s50, 1
          %s297 = scalar_lea.sflag [#allocation4], %s296
          %s298 = sand.u32 %s50, 1
          %s299 = smul.addr %s298, 8
          %s300 = scalar_lea.vmem [#allocation3], %s299
          %s302 = ssub.s32 128, 128
          %303 = vsyncadd %s297, %s302
          %s304 = smul.addr %s33, 4
          %s305 = sadd.s32 %s34, %s304
          %s306 = smul.addr %s305, 32
          %s307 = scalar_lea.hbm %s0, %s306
          %s308 = sshll.u32 %s300, 4
          %s309 = int_to_ptr.vmem [resolvable:$true] %s308
          %314 = dma.hbm_to_vmem [thread:$0]  %s307, 128, %s309, %s297, 32, 32, 2
        $region40: #{tpu_custom_call.1} parent=35 // pred_fallthru
          _
        // Predicated region
        $region41: #{tpu_custom_call.1} parent=35 // pred_check
          %p315 = pneg %p88
        $region42: #{tpu_custom_call.1} parent=35 // pred_check_branch
          %317 = sbr.rel (%p315) target = $region44
        $region43: #{tpu_custom_call.1} parent=35 // pred_region
          %s318 = sand.u32 %s78, 1
          %s319 = scalar_lea.sflag [#allocation8], %s318
          %s320 = sand.u32 %s78, 1
          %s321 = smul.addr %s320, 8
          %s322 = scalar_lea.vmem [#allocation7], %s321
          %s324 = ssub.s32 128, 128
          %325 = vsyncadd %s319, %s324
          %s326 = smul.addr %s33, 4
          %s327 = sadd.s32 %s34, %s326
          %s328 = smul.addr %s327, 32
          %s329 = scalar_lea.hbm %s1, %s328
          %s330 = sshll.u32 %s322, 4
          %s331 = int_to_ptr.vmem [resolvable:$true] %s330
          %336 = dma.hbm_to_vmem [thread:$0]  %s329, 128, %s331, %s319, 32, 32, 2
        $region44: #{tpu_custom_call.1} parent=35 // pred_fallthru
          _
      $region36: #{tpu_custom_call.1} parent=5 // pred_fallthru
        _
      %p337 = scmp.le.s32.totalorder 1, %s26
      %p338 = scmp.lt.s32.totalorder %s26, 3
      %p339 = pnand %p337, %p338
      %p340 = pneg %p339
      // Predicated region
      $region45: #{tpu_custom_call.1} parent=5 // pred_check
        _
      $region46: #{tpu_custom_call.1} parent=5 // pred_check_branch
        %342 = sbr.rel (%p339) target = $region48
      $region47: #{tpu_custom_call.1} parent=5 // pred_region
        %s343 = ssub.s32 %s26, 1
        %s344 = sand.u32 %s53, 1
        %s345 = scalar_lea.sflag [#allocation4], %s344
        %s346 = sand.u32 %s53, 1
        %s347 = smul.addr %s346, 8
        %s348 = scalar_lea.vmem [#allocation3], %s347
        // Predicated region
        $region49: #{tpu_custom_call.1} parent=47 // pred_check
          %p349 = pneg %p66
        $region50: #{tpu_custom_call.1} parent=47 // pred_check_branch
          %351 = sbr.rel (%p349) target = $region52
        $region51: #{tpu_custom_call.1} parent=47 // pred_region
          %352 = dma.done %s345, 128
        $region52: #{tpu_custom_call.1} parent=47 // pred_fallthru
          _
        %s353 = sand.u32 %s81, 1
        %s354 = scalar_lea.sflag [#allocation8], %s353
        %s355 = sand.u32 %s81, 1
        %s356 = smul.addr %s355, 8
        %s357 = scalar_lea.vmem [#allocation7], %s356
        // Predicated region
        $region53: #{tpu_custom_call.1} parent=47 // pred_check
          %p358 = pneg %p94
        $region54: #{tpu_custom_call.1} parent=47 // pred_check_branch
          %360 = sbr.rel (%p358) target = $region56
        $region55: #{tpu_custom_call.1} parent=47 // pred_region
          %361 = dma.done %s354, 128
        $region56: #{tpu_custom_call.1} parent=47 // pred_fallthru
          _
        // Predicated region
        $region57: #{tpu_custom_call.1} parent=47 // pred_check
          %p362 = pneg %p115
        $region58: #{tpu_custom_call.1} parent=47 // pred_check_branch
          %364 = sbr.rel (%p362) target = $region60
        $region59: #{tpu_custom_call.1} parent=47 // pred_region
          %365 = dma.done [#allocation6], 16
        $region60: #{tpu_custom_call.1} parent=47 // pred_fallthru
          _
        // Predicated region
        $region61: #{tpu_custom_call.1} parent=47 // pred_check
          %p366 = pneg %p136
        $region62: #{tpu_custom_call.1} parent=47 // pred_check_branch
          %368 = sbr.rel (%p366) target = $region64
        $region63: #{tpu_custom_call.1} parent=47 // pred_region
          %369 = dma.done [#allocation11], 16
        $region64: #{tpu_custom_call.1} parent=47 // pred_fallthru
          _
        // Predicated region
        $region65: #{tpu_custom_call.1} parent=47 // pred_check
          %p370 = pneg %p157
        $region66: #{tpu_custom_call.1} parent=47 // pred_check_branch
          %372 = sbr.rel (%p370) target = $region68
        $region67: #{tpu_custom_call.1} parent=47 // pred_region
          %373 = dma.done [#allocation11], 16
        $region68: #{tpu_custom_call.1} parent=47 // pred_fallthru
          _
        // Predicated region
        $region69: #{tpu_custom_call.1} parent=47 // pred_check
          %p374 = pneg %p178
        $region70: #{tpu_custom_call.1} parent=47 // pred_check_branch
          %376 = sbr.rel (%p374) target = $region72
        $region71: #{tpu_custom_call.1} parent=47 // pred_region
          %377 = dma.done [#allocation14], 16
        $region72: #{tpu_custom_call.1} parent=47 // pred_fallthru
          _
        %378 = sfence
        %s379 = sand.u32 %s53, 1
        %s380 = scalar_lea.sflag [#allocation4], %s379
        %s381 = sand.u32 %s53, 1
        %s382 = smul.addr %s381, 8
        %s383 = scalar_lea.vmem [#allocation3], %s382
        %p384 = pneg %p66
        %p385 = pneg %p63
        %s386 = sand.u32 %s81, 1
        %s387 = scalar_lea.sflag [#allocation8], %s386
        %s388 = sand.u32 %s81, 1
        %s389 = smul.addr %s388, 8
        %s390 = scalar_lea.vmem [#allocation7], %s389
        %p391 = pneg %p94
        %p392 = pneg %p91
        %p393 = pneg %p115
        %p394 = pneg %p112
        %p395 = pneg %p136
        %p396 = pneg %p133
        %p397 = pneg %p157
        %p398 = pneg %p154
        %p399 = pneg %p178
        %p400 = pneg %p175
        %p401 = pneg %p199
        %p402 = pneg %p196
        %p403 = pneg %p227
        %p404 = pneg %p224
        %s405 = sand.u32 %s214, 1
        %s406 = scalar_lea.sflag [#allocation5], %s405
        %s407 = sand.u32 %s214, 1
        %s408 = smul.addr %s407, 8
        %s409 = scalar_lea.vmem [#allocation15], %s408
        %v410 = vld [vmem:[%s348] sm:$0x3]
        %v411 = vld [vmem:[%s348 + $0x2] sm:$0x3]
        %v412 = vld [vmem:[%s348 + $0x4] sm:$0x3]
        %v413 = vld [vmem:[%s348 + $0x6] sm:$0x3]
        %v414 = vld [vmem:[%s357] sm:$0x3]
        %v415 = vld [vmem:[%s357 + $0x2] sm:$0x3]
        %v416 = vld [vmem:[%s357 + $0x4] sm:$0x3]
        %v417 = vld [vmem:[%s357 + $0x6] sm:$0x3]
        %s418 = sld [smem:[#allocation9]]
        %v419 = vstv %s418
        %v420 = vmul.f32 %v410, %v419
        %s421 = sld [smem:[#allocation12]]
        %v422 = vstv %s421
        %v423 = vadd.f32 %v420, %v422
        %s424 = sld [smem:[#allocation9 + $0x1]]
        %v425 = vstv %s424
        %v426 = vmul.f32 %v411, %v425
        %v427 = vadd.f32 %v423, %v426
        %s428 = sld [smem:[#allocation9 + $0x2]]
        %v429 = vstv %s428
        %v430 = vmul.f32 %v412, %v429
        %v431 = vadd.f32 %v427, %v430
        %s432 = sld [smem:[#allocation9 + $0x3]]
        %v433 = vstv %s432
        %v434 = vmul.f32 %v413, %v433
        %v435 = vadd.f32 %v431, %v434
        %s436 = sld [smem:[#allocation10]]
        %v437 = vstv %s436
        %v438 = vmul.f32 %v414, %v437
        %v439 = vadd.f32 %v435, %v438
        %s440 = sld [smem:[#allocation10 + $0x1]]
        %v441 = vstv %s440
        %v442 = vmul.f32 %v415, %v441
        %v443 = vadd.f32 %v439, %v442
        %s444 = sld [smem:[#allocation10 + $0x2]]
        %v445 = vstv %s444
        %v446 = vmul.f32 %v416, %v445
        %v447 = vadd.f32 %v443, %v446
        %s448 = sld [smem:[#allocation10 + $0x3]]
        %v449 = vstv %s448
        %v450 = vmul.f32 %v417, %v449
        %v451 = vadd.f32 %v447, %v450
        %v452 = vmax.f32 %v451, 0.0
        %s453 = sld [smem:[#allocation13]]
        %v454 = vstv %s453
        %v455 = vmul.f32 %v452, %v454
        %s456 = sld [smem:[#allocation9 + $0x4]]
        %v457 = vstv %s456
        %v458 = vmul.f32 %v410, %v457
        %s459 = sld [smem:[#allocation12 + $0x1]]
        %v460 = vstv %s459
        %v461 = vadd.f32 %v458, %v460
        %s462 = sld [smem:[#allocation9 + $0x5]]
        %v463 = vstv %s462
        %v464 = vmul.f32 %v411, %v463
        %v465 = vadd.f32 %v461, %v464
        %s466 = sld [smem:[#allocation9 + $0x6]]
        %v467 = vstv %s466
        %v468 = vmul.f32 %v412, %v467
        %v469 = vadd.f32 %v465, %v468
        %s470 = sld [smem:[#allocation9 + $0x7]]
        %v471 = vstv %s470
        %v472 = vmul.f32 %v413, %v471
        %v473 = vadd.f32 %v469, %v472
        %s474 = sld [smem:[#allocation10 + $0x4]]
        %v475 = vstv %s474
        %v476 = vmul.f32 %v414, %v475
        %v477 = vadd.f32 %v473, %v476
        %s478 = sld [smem:[#allocation10 + $0x5]]
        %v479 = vstv %s478
        %v480 = vmul.f32 %v415, %v479
        %v481 = vadd.f32 %v477, %v480
        %s482 = sld [smem:[#allocation10 + $0x6]]
        %v483 = vstv %s482
        %v484 = vmul.f32 %v416, %v483
        %v485 = vadd.f32 %v481, %v484
        %s486 = sld [smem:[#allocation10 + $0x7]]
        %v487 = vstv %s486
        %v488 = vmul.f32 %v417, %v487
        %v489 = vadd.f32 %v485, %v488
        %v490 = vmax.f32 %v489, 0.0
        %s491 = sld [smem:[#allocation13 + $0x1]]
        %v492 = vstv %s491
        %v493 = vmul.f32 %v490, %v492
        %v494 = vadd.f32 %v455, %v493
        %s495 = sld [smem:[#allocation9 + $0x8]]
        %v496 = vstv %s495
        %v497 = vmul.f32 %v410, %v496
        %s498 = sld [smem:[#allocation12 + $0x2]]
        %v499 = vstv %s498
        %v500 = vadd.f32 %v497, %v499
        %s501 = sld [smem:[#allocation9 + $0x9]]
        %v502 = vstv %s501
        %v503 = vmul.f32 %v411, %v502
        %v504 = vadd.f32 %v500, %v503
        %s505 = sld [smem:[#allocation9 + $0xa]]
        %v506 = vstv %s505
        %v507 = vmul.f32 %v412, %v506
        %v508 = vadd.f32 %v504, %v507
        %s509 = sld [smem:[#allocation9 + $0xb]]
        %v510 = vstv %s509
        %v511 = vmul.f32 %v413, %v510
        %v512 = vadd.f32 %v508, %v511
        %s513 = sld [smem:[#allocation10 + $0x8]]
        %v514 = vstv %s513
        %v515 = vmul.f32 %v414, %v514
        %v516 = vadd.f32 %v512, %v515
        %s517 = sld [smem:[#allocation10 + $0x9]]
        %v518 = vstv %s517
        %v519 = vmul.f32 %v415, %v518
        %v520 = vadd.f32 %v516, %v519
        %s521 = sld [smem:[#allocation10 + $0xa]]
        %v522 = vstv %s521
        %v523 = vmul.f32 %v416, %v522
        %v524 = vadd.f32 %v520, %v523
        %s525 = sld [smem:[#allocation10 + $0xb]]
        %v526 = vstv %s525
        %v527 = vmul.f32 %v417, %v526
        %v528 = vadd.f32 %v524, %v527
        %v529 = vmax.f32 %v528, 0.0
        %s530 = sld [smem:[#allocation13 + $0x2]]
        %v531 = vstv %s530
        %v532 = vmul.f32 %v529, %v531
        %v533 = vadd.f32 %v494, %v532
        %s534 = sld [smem:[#allocation9 + $0xc]]
        %v535 = vstv %s534
        %v536 = vmul.f32 %v410, %v535
        %s537 = sld [smem:[#allocation12 + $0x3]]
        %v538 = vstv %s537
        %v539 = vadd.f32 %v536, %v538
        %s540 = sld [smem:[#allocation9 + $0xd]]
        %v541 = vstv %s540
        %v542 = vmul.f32 %v411, %v541
        %v543 = vadd.f32 %v539, %v542
        %s544 = sld [smem:[#allocation9 + $0xe]]
        %v545 = vstv %s544
        %v546 = vmul.f32 %v412, %v545
        %v547 = vadd.f32 %v543, %v546
        %s548 = sld [smem:[#allocation9 + $0xf]]
        %v549 = vstv %s548
        %v550 = vmul.f32 %v413, %v549
        %v551 = vadd.f32 %v547, %v550
        %s552 = sld [smem:[#allocation10 + $0xc]]
        %v553 = vstv %s552
        %v554 = vmul.f32 %v414, %v553
        %v555 = vadd.f32 %v551, %v554
        %s556 = sld [smem:[#allocation10 + $0xd]]
        %v557 = vstv %s556
        %v558 = vmul.f32 %v415, %v557
        %v559 = vadd.f32 %v555, %v558
        %s560 = sld [smem:[#allocation10 + $0xe]]
        %v561 = vstv %s560
        %v562 = vmul.f32 %v416, %v561
        %v563 = vadd.f32 %v559, %v562
        %s564 = sld [smem:[#allocation10 + $0xf]]
        %v565 = vstv %s564
        %v566 = vmul.f32 %v417, %v565
        %v567 = vadd.f32 %v563, %v566
        %v568 = vmax.f32 %v567, 0.0
        %s569 = sld [smem:[#allocation13 + $0x3]]
        %v570 = vstv %s569
        %v571 = vmul.f32 %v568, %v570
        %v572 = vadd.f32 %v533, %v571
        %s573 = sld [smem:[#allocation9 + $0x10]]
        %v574 = vstv %s573
        %v575 = vmul.f32 %v410, %v574
        %s576 = sld [smem:[#allocation12 + $0x4]]
        %v577 = vstv %s576
        %v578 = vadd.f32 %v575, %v577
        %s579 = sld [smem:[#allocation9 + $0x11]]
        %v580 = vstv %s579
        %v581 = vmul.f32 %v411, %v580
        %v582 = vadd.f32 %v578, %v581
        %s583 = sld [smem:[#allocation9 + $0x12]]
        %v584 = vstv %s583
        %v585 = vmul.f32 %v412, %v584
        %v586 = vadd.f32 %v582, %v585
        %s587 = sld [smem:[#allocation9 + $0x13]]
        %v588 = vstv %s587
        %v589 = vmul.f32 %v413, %v588
        %v590 = vadd.f32 %v586, %v589
        %s591 = sld [smem:[#allocation10 + $0x10]]
        %v592 = vstv %s591
        %v593 = vmul.f32 %v414, %v592
        %v594 = vadd.f32 %v590, %v593
        %s595 = sld [smem:[#allocation10 + $0x11]]
        %v596 = vstv %s595
        %v597 = vmul.f32 %v415, %v596
        %v598 = vadd.f32 %v594, %v597
        %s599 = sld [smem:[#allocation10 + $0x12]]
        %v600 = vstv %s599
        %v601 = vmul.f32 %v416, %v600
        %v602 = vadd.f32 %v598, %v601
        %s603 = sld [smem:[#allocation10 + $0x13]]
        %v604 = vstv %s603
        %v605 = vmul.f32 %v417, %v604
        %v606 = vadd.f32 %v602, %v605
        %v607 = vmax.f32 %v606, 0.0
        %s608 = sld [smem:[#allocation13 + $0x4]]
        %v609 = vstv %s608
        %v610 = vmul.f32 %v607, %v609
        %v611 = vadd.f32 %v572, %v610
        %s612 = sld [smem:[#allocation9 + $0x14]]
        %v613 = vstv %s612
        %v614 = vmul.f32 %v410, %v613
        %s615 = sld [smem:[#allocation12 + $0x5]]
        %v616 = vstv %s615
        %v617 = vadd.f32 %v614, %v616
        %s618 = sld [smem:[#allocation9 + $0x15]]
        %v619 = vstv %s618
        %v620 = vmul.f32 %v411, %v619
        %v621 = vadd.f32 %v617, %v620
        %s622 = sld [smem:[#allocation9 + $0x16]]
        %v623 = vstv %s622
        %v624 = vmul.f32 %v412, %v623
        %v625 = vadd.f32 %v621, %v624
        %s626 = sld [smem:[#allocation9 + $0x17]]
        %v627 = vstv %s626
        %v628 = vmul.f32 %v413, %v627
        %v629 = vadd.f32 %v625, %v628
        %s630 = sld [smem:[#allocation10 + $0x14]]
        %v631 = vstv %s630
        %v632 = vmul.f32 %v414, %v631
        %v633 = vadd.f32 %v629, %v632
        %s634 = sld [smem:[#allocation10 + $0x15]]
        %v635 = vstv %s634
        %v636 = vmul.f32 %v415, %v635
        %v637 = vadd.f32 %v633, %v636
        %s638 = sld [smem:[#allocation10 + $0x16]]
        %v639 = vstv %s638
        %v640 = vmul.f32 %v416, %v639
        %v641 = vadd.f32 %v637, %v640
        %s642 = sld [smem:[#allocation10 + $0x17]]
        %v643 = vstv %s642
        %v644 = vmul.f32 %v417, %v643
        %v645 = vadd.f32 %v641, %v644
        %v646 = vmax.f32 %v645, 0.0
        %s647 = sld [smem:[#allocation13 + $0x5]]
        %v648 = vstv %s647
        %v649 = vmul.f32 %v646, %v648
        %v650 = vadd.f32 %v611, %v649
        %s651 = sld [smem:[#allocation9 + $0x18]]
        %v652 = vstv %s651
        %v653 = vmul.f32 %v410, %v652
        %s654 = sld [smem:[#allocation12 + $0x6]]
        %v655 = vstv %s654
        %v656 = vadd.f32 %v653, %v655
        %s657 = sld [smem:[#allocation9 + $0x19]]
        %v658 = vstv %s657
        %v659 = vmul.f32 %v411, %v658
        %v660 = vadd.f32 %v656, %v659
        %s661 = sld [smem:[#allocation9 + $0x1a]]
        %v662 = vstv %s661
        %v663 = vmul.f32 %v412, %v662
        %v664 = vadd.f32 %v660, %v663
        %s665 = sld [smem:[#allocation9 + $0x1b]]
        %v666 = vstv %s665
        %v667 = vmul.f32 %v413, %v666
        %v668 = vadd.f32 %v664, %v667
        %s669 = sld [smem:[#allocation10 + $0x18]]
        %v670 = vstv %s669
        %v671 = vmul.f32 %v414, %v670
        %v672 = vadd.f32 %v668, %v671
        %s673 = sld [smem:[#allocation10 + $0x19]]
        %v674 = vstv %s673
        %v675 = vmul.f32 %v415, %v674
        %v676 = vadd.f32 %v672, %v675
        %s677 = sld [smem:[#allocation10 + $0x1a]]
        %v678 = vstv %s677
        %v679 = vmul.f32 %v416, %v678
        %v680 = vadd.f32 %v676, %v679
        %s681 = sld [smem:[#allocation10 + $0x1b]]
        %v682 = vstv %s681
        %v683 = vmul.f32 %v417, %v682
        %v684 = vadd.f32 %v680, %v683
        %v685 = vmax.f32 %v684, 0.0
        %s686 = sld [smem:[#allocation13 + $0x6]]
        %v687 = vstv %s686
        %v688 = vmul.f32 %v685, %v687
        %v689 = vadd.f32 %v650, %v688
        %s690 = sld [smem:[#allocation9 + $0x1c]]
        %v691 = vstv %s690
        %v692 = vmul.f32 %v410, %v691
        %s693 = sld [smem:[#allocation12 + $0x7]]
        %v694 = vstv %s693
        %v695 = vadd.f32 %v692, %v694
        %s696 = sld [smem:[#allocation9 + $0x1d]]
        %v697 = vstv %s696
        %v698 = vmul.f32 %v411, %v697
        %v699 = vadd.f32 %v695, %v698
        %s700 = sld [smem:[#allocation9 + $0x1e]]
        %v701 = vstv %s700
        %v702 = vmul.f32 %v412, %v701
        %v703 = vadd.f32 %v699, %v702
        %s704 = sld [smem:[#allocation9 + $0x1f]]
        %v705 = vstv %s704
        %v706 = vmul.f32 %v413, %v705
        %v707 = vadd.f32 %v703, %v706
        %s708 = sld [smem:[#allocation10 + $0x1c]]
        %v709 = vstv %s708
        %v710 = vmul.f32 %v414, %v709
        %v711 = vadd.f32 %v707, %v710
        %s712 = sld [smem:[#allocation10 + $0x1d]]
        %v713 = vstv %s712
        %v714 = vmul.f32 %v415, %v713
        %v715 = vadd.f32 %v711, %v714
        %s716 = sld [smem:[#allocation10 + $0x1e]]
        %v717 = vstv %s716
        %v718 = vmul.f32 %v416, %v717
        %v719 = vadd.f32 %v715, %v718
        %s720 = sld [smem:[#allocation10 + $0x1f]]
        %v721 = vstv %s720
        %v722 = vmul.f32 %v417, %v721
        %v723 = vadd.f32 %v719, %v722
        %v724 = vmax.f32 %v723, 0.0
        %s725 = sld [smem:[#allocation13 + $0x7]]
        %v726 = vstv %s725
        %v727 = vmul.f32 %v724, %v726
        %v728 = vadd.f32 %v689, %v727
        %s729 = sld [smem:[#allocation2]]
        %v730 = vstv %s729
        %v731 = vadd.f32 %v728, %v730
        %v732 = vxor.u32 %v731, 2147483648
        %v733 = vmul.f32 %v732, 1.442695
        %v734 = vpow.pop %v733
        %v735 = vadd.f32 %v734, 1.0
        %v736 = vrcp.pop %v735
        %v737 = vmul.f32 1.0, %v736
        %v738 = vmul.f32 %v414, %v737
        %v739 = vmul.f32 %v415, %v737
        %v740 = vmul.f32 %v416, %v737
        %v741 = vmul.f32 %v417, %v737
        %742 = vst [vmem:[%s409] sm:$0x3] %v738
        %743 = vst [vmem:[%s409 + $0x2] sm:$0x3] %v739
        %744 = vst [vmem:[%s409 + $0x4] sm:$0x3] %v740
        %745 = vst [vmem:[%s409 + $0x6] sm:$0x3] %v741
        %s746 = sand.u32 %s214, 1
        %s747 = scalar_lea.sflag [#allocation5], %s746
        %s748 = sand.u32 %s214, 1
        %s749 = smul.addr %s748, 8
        %s750 = scalar_lea.vmem [#allocation15], %s749
        // Predicated region
        $region73: #{tpu_custom_call.1} parent=47 // pred_check
          %p751 = pneg %p224
        $region74: #{tpu_custom_call.1} parent=47 // pred_check_branch
          %753 = sbr.rel (%p751) target = $region76
        $region75: #{tpu_custom_call.1} parent=47 // pred_region
          %s755 = ssub.s32 128, 128
          %756 = vsyncadd %s747, %s755
          %s757 = smul.addr %s35, 4
          %s758 = sadd.s32 %s36, %s757
          %s759 = smul.addr %s758, 32
          %s760 = scalar_lea.hbm %s7, %s759
          %s761 = sshll.u32 %s750, 4
          %s762 = int_to_ptr.vmem [resolvable:$true] %s761
          %767 = dma.vmem_to_hbm [thread:$0]  %s762, 128, %s760, %s747, 32, 32, 2
        $region76: #{tpu_custom_call.1} parent=47 // pred_fallthru
          _
      $region48: #{tpu_custom_call.1} parent=5 // pred_fallthru
        _
      %p768 = scmp.le.s32.totalorder 2, %s26
      // Predicated region
      $region77: #{tpu_custom_call.1} parent=5 // pred_check
        %p769 = pneg %p768
      $region78: #{tpu_custom_call.1} parent=5 // pred_check_branch
        %771 = sbr.rel (%p769) target = $region80
      $region79: #{tpu_custom_call.1} parent=5 // pred_region
        %s772 = ssub.s32 %s26, 2
        // Predicated region
        $region81: #{tpu_custom_call.1} parent=79 // pred_check
          %p773 = pneg %p230
        $region82: #{tpu_custom_call.1} parent=79 // pred_check_branch
          %775 = sbr.rel (%p773) target = $region84
        $region83: #{tpu_custom_call.1} parent=79 // pred_region
          %s776 = sand.u32 %s215, 1
          %s777 = scalar_lea.sflag [#allocation5], %s776
          %s778 = sand.u32 %s215, 1
          %s779 = smul.addr %s778, 8
          %s780 = scalar_lea.vmem [#allocation15], %s779
          %781 = dma.done %s777, 128
        $region84: #{tpu_custom_call.1} parent=79 // pred_fallthru
          _
      $region80: #{tpu_custom_call.1} parent=5 // pred_fallthru
        _
    $region6: #{tpu_custom_call.1} parent=1 // loop_footer
      %s30 = sadd.s32 1, %s26
    $region7: #{tpu_custom_call.1} parent=1 // loop_footer_branch
      %25 = sbr.rel target = $region3
    $region8: #{tpu_custom_call.1} parent=1 // loop_exit
      _
    %782 = vsyncpa [#allocation4], 1
    %s783 = scalar_lea.sflag [#allocation4], 1
    %784 = vsyncpa %s783, 1
    %785 = vsyncpa [#allocation8], 1
    %s786 = scalar_lea.sflag [#allocation8], 1
    %787 = vsyncpa %s786, 1
    %788 = vsyncpa [#allocation5], 1
    %s789 = scalar_lea.sflag [#allocation5], 1
    %790 = vsyncpa %s789, 1
    %791 = vsyncpa [#allocation6], 1
    %s792 = scalar_lea.sflag [#allocation6], 1
    %793 = vsyncpa %s792, 1
    %794 = vsyncpa [#allocation11], 1
    %795 = vsyncpa [#allocation14], 1

</llo_original>
